<compile_context>
chip_gen: v6e
topology: v6e:2x2x1
jax: 0.10.0
libtpu: 0.0.40
codegen_flags: <defaults>
</compile_context>

<pallas_src>
import functools

import jax
import jax.numpy as jnp
from jax.experimental import pallas as pl
from jax.experimental.pallas import tpu as pltpu


def _prelu(x, a):
    return jnp.where(x > 0, x, a * x)


def _inception_kernel(x_ref, wf_ref, bf_ref, af_ref,
                      w3_ref, b3_ref, a3_ref, mask_ref, *rest,
                      clip, W, Cout, kmax):
    # Layout: channels on sublanes, nb folded images flattened on lanes.
    #   x_ref    : (Cin, L)           L = nb * H * W
    #   wf_ref   : (n_b*Cout, Cin)    fused 1x1 weights (branch order 0,1[,2],3)
    #   bf_ref   : (n_b*Cout, 1)      fused 1x1 biases
    #   af_ref   : (n_b*Cout, 1)      fused 1x1 PReLU slopes
    #   w3_ref   : (Cout, 9*Cout)     3x3 weights, tap-major im2col layout
    #   b3_ref/a3_ref : (Cout, 1)     3x3 bias / PReLU slope
    #   mask_ref : (kmax*kmax, 1, L)  per-tap 0/1 validity masks (per image)
    #   w5_ref   : (Cout, 25*Cout)    5x5 weights (only when clip=False)
    #   out_ref  : (n_b*Cout, L)
    #   slab3/slab5 : disjoint im2col scratches (no WAR hazard between convs)
    if clip:
        out_ref, slab3_ref = rest
        w5_ref = b5_ref = a5_ref = slab5_ref = None
    else:
        w5_ref, b5_ref, a5_ref, out_ref, slab3_ref, slab5_ref = rest

    x2d = x_ref[...]                                  # (Cin, L)
    L = x2d.shape[1]
    pad_max = kmax // 2

    # ---- fused 1x1 stage: one MXU matmul + one bias add + one PReLU -------
    z = jnp.dot(wf_ref[...], x2d, preferred_element_type=jnp.float32)
    z = z + bf_ref[...]
    z = jnp.where(z > 0, z, af_ref[...] * z)          # per-row (per-branch) slope

    # Pure-1x1 branches (branch0 and branch3 = AvgPool(1,1)+1x1) stored first,
    # before the tap loops, to end their live ranges early.
    out_ref[0:Cout, :] = z[0:Cout, :]
    if clip:
        out_ref[2 * Cout:3 * Cout, :] = z[2 * Cout:3 * Cout, :]
    else:
        out_ref[3 * Cout:4 * Cout, :] = z[3 * Cout:4 * Cout, :]

    def spatial_conv(t, slab_ref, wk_ref, bk_ref, ak_ref, ksize):
        # "same" KxK conv of t (Cout, L) via im2col: K*K lane rolls, each
        # masked by a precomputed per-image validity row, filling a dedicated
        # slab; then one wide-K MXU matmul + bias + PReLU.
        pad = ksize // 2
        ntap = ksize * ksize
        for tap in range(ntap):
            dy = tap // ksize - pad
            dx = tap % ksize - pad
            d = dy * W + dx
            # out[p] = t[p + d] at valid positions; invalid positions -> 0.
            # TODO(synk): check the bundle dump for >1-2 XLU pushes per roll at
            # large (L-|d|) shifts; if so, split into row-roll + small lane-roll.
            shifted = t if d == 0 else pltpu.roll(t, shift=(-d) % L, axis=1)
            m = (dy + pad_max) * kmax + (dx + pad_max)
            slab_ref[tap * Cout:(tap + 1) * Cout, :] = (
                shifted * mask_ref[m])
        y = jnp.dot(wk_ref[...], slab_ref[...],
                    preferred_element_type=jnp.float32) + bk_ref[...]
        return _prelu(y, ak_ref[...])

    # branch1: 1x1+PReLU (rows Cout:2Cout of z) -> 3x3 conv (pad=1) + PReLU
    out_ref[Cout:2 * Cout, :] = spatial_conv(
        z[Cout:2 * Cout, :], slab3_ref, w3_ref, b3_ref, a3_ref, 3)
    if not clip:
        # branch2: 1x1+PReLU -> 5x5 conv (pad=2) + PReLU
        out_ref[2 * Cout:3 * Cout, :] = spatial_conv(
            z[2 * Cout:3 * Cout, :], slab5_ref, w5_ref, b5_ref, a5_ref, 5)


def _tensorcores_per_chip():
    # Best-effort TC count query; any failure falls back to 1 (v5e/v6e-like).
    try:
        info = pltpu.get_tpu_info()
        for attr in ("num_tensorcores", "tensorcore_count", "num_cores",
                     "cores_per_chip", "core_count"):
            v = getattr(info, attr, None)
            if isinstance(v, int) and 0 < v <= 8:
                return v
    except Exception:
        pass
    try:
        v = getattr(jax.devices()[0], "num_cores", None)
        if isinstance(v, int) and 0 < v <= 8:
            return v
    except Exception:
        pass
    return 1


def _pick_batch_fold(N, Cout, HW, ntap_max, ntc, slab_budget_bytes=8 << 20):
    # Fold as many images per grid step as possible on single-TC chips, but
    # keep >= ntc grid steps so v7x's 2 TensorCores both get work, and keep
    # the largest im2col slab within a conservative VMEM budget.
    best = 1
    for nb in range(1, N + 1):
        if N % nb:
            continue
        if nb > 1 and (N // nb) < ntc:
            continue
        if ntap_max * Cout * nb * HW * 4 > slab_budget_bytes:
            continue
        best = nb
    return best


def inception_block(x_nchw, params, clip=False):
    """Forward pass of Inception_block. Input/output are NCHW like PyTorch."""
    N, Cin, H, W = x_nchw.shape
    HW = H * W
    Cout = params["w0"].shape[0]
    n_b = 3 if clip else 4
    kmax = 3 if clip else 5
    pad_max = kmax // 2
    ntap3, ntap5 = 9, 25
    ntap_max = ntap3 if clip else ntap5

    nb = _pick_batch_fold(N, Cout, HW, ntap_max, _tensorcores_per_chip())
    L = nb * HW
    G = N // nb

    # Lane-fold the batch: (N, Cin, HW) -> (Cin, N*HW).  Small one-time HBM
    # shuffle; channels stay on sublanes, positions (+ folded images) on lanes.
    x = (x_nchw.reshape(N, Cin, HW).astype(jnp.float32)
         .transpose(1, 0, 2).reshape(Cin, N * HW))

    al = params["alphas"].astype(jnp.float32)
    if clip:
        wkeys, bkeys, aidx = ("w0", "w1a", "w3"), ("b0", "b1a", "b3"), (0, 1, 5)
    else:
        wkeys = ("w0", "w1a", "w2a", "w3")
        bkeys = ("b0", "b1a", "b2a", "b3")
        aidx = (0, 1, 3, 5)

    # Fused 1x1 weights / biases / PReLU slopes (per fused output row).
    wf = jnp.concatenate(
        [params[k].reshape(Cout, Cin).astype(jnp.float32) for k in wkeys], 0)
    bf = jnp.concatenate(
        [params[k].astype(jnp.float32) for k in bkeys], 0).reshape(-1, 1)
    af = jnp.concatenate(
        [jnp.full((Cout,), al[i]) for i in aidx], 0).reshape(-1, 1)

    def kspat(w):  # (O, I, kh, kw) -> (O, kh*kw*I), tap-major (matches slab)
        o, i, kh, kw = w.shape
        return jnp.transpose(w, (0, 2, 3, 1)).reshape(o, kh * kw * i)

    w3x3 = kspat(params["w1b"]).astype(jnp.float32)
    b3x3 = params["b1b"].astype(jnp.float32).reshape(-1, 1)
    a3x3 = jnp.full((Cout, 1), al[2], jnp.float32)

    # Precomputed per-tap validity masks.  They are per-image (q = pos % HW)
    # then tiled across the nb folded images, so lane rolls never read pixels
    # from a neighbouring image.  The 3x3 taps index into the same 5x5 grid.
    q = jnp.arange(HW, dtype=jnp.int32)
    row, col = q // W, q % W
    masks = []
    for dy in range(-pad_max, pad_max + 1):
        for dx in range(-pad_max, pad_max + 1):
            masks.append((row + dy >= 0) & (row + dy < H) &
                         (col + dx >= 0) & (col + dx < W))
    mask = jnp.tile(jnp.stack(masks).astype(jnp.float32), (1, nb))[:, None, :]

    args = [x, wf, bf, af, w3x3, b3x3, a3x3, mask]

    def full_spec(a):
        nd = a.ndim
        return pl.BlockSpec(a.shape, lambda g, _nd=nd: (0,) * _nd)

    in_specs = [pl.BlockSpec((Cin, L), lambda g: (0, g)),     # x
                full_spec(wf), full_spec(bf), full_spec(af),
                full_spec(w3x3), full_spec(b3x3), full_spec(a3x3),
                full_spec(mask)]

    scratch_shapes = [pltpu.VMEM((ntap3 * Cout, L), jnp.float32)]
    if not clip:
        w5x5 = kspat(params["w2b"]).astype(jnp.float32)
        b5x5 = params["b2b"].astype(jnp.float32).reshape(-1, 1)
        a5x5 = jnp.full((Cout, 1), al[4], jnp.float32)
        args += [w5x5, b5x5, a5x5]
        in_specs += [full_spec(w5x5), full_spec(b5x5), full_spec(a5x5)]
        # Disjoint slab for the 5x5 branch: no WAR hazard with the 3x3 dot.
        scratch_shapes.append(pltpu.VMEM((ntap5 * Cout, L), jnp.float32))

    # TODO(synk): at much larger Cout/HW switch to tap-grouped accumulation
    # (and/or set vmem_limit_bytes) so the slabs stay under the 16/32 MiB
    # default scoped-VMEM ceilings on v5e / v6e+v7x.

    out = pl.pallas_call(
        functools.partial(_inception_kernel, clip=clip, W=W, Cout=Cout,
                          kmax=kmax),
        out_shape=jax.ShapeDtypeStruct((n_b * Cout, N * HW), jnp.float32),
        grid=(G,),
        in_specs=in_specs,
        out_specs=pl.BlockSpec((n_b * Cout, L), lambda g: (0, g)),
        scratch_shapes=scratch_shapes,
        compiler_params=pltpu.CompilerParams(
            dimension_semantics=("parallel",)),
    )(*args)

    return (out.reshape(n_b * Cout, N, HW).transpose(1, 0, 2)
            .reshape(N, n_b * Cout, H, W))


def init_params(key, cin, cout):
    ks = jax.random.split(key, 12)

    def w(k, shape, fan_in):
        bound = 1.0 / (fan_in ** 0.5)
        return jax.random.uniform(k, shape, jnp.float32, -bound, bound)

    return {
        "w0": w(ks[0], (cout, cin, 1, 1), cin),
        "b0": w(ks[1], (cout,), cin),
        "w1a": w(ks[2], (cout, cin, 1, 1), cin),
        "b1a": w(ks[3], (cout,), cin),
        "w1b": w(ks[4], (cout, cout, 3, 3), cout * 9),
        "b1b": w(ks[5], (cout,), cout * 9),
        "w2a": w(ks[6], (cout, cin, 1, 1), cin),
        "b2a": w(ks[7], (cout,), cin),
        "w2b": w(ks[8], (cout, cout, 5, 5), cout * 25),
        "b2b": w(ks[9], (cout,), cout * 25),
        "w3": w(ks[10], (cout, cin, 1, 1), cin),
        "b3": w(ks[11], (cout,), cin),
        # PReLU slopes: (a0, a1a, a1b, a2a, a2b, a3); torch default is 0.25,
        # distinct values used here to exercise the per-branch indexing.
        "alphas": jnp.array([0.25, 0.10, 0.20, 0.05, 0.30, 0.15], jnp.float32),
    }


# ----- pure-JAX reference (matches torch conv semantics, NCHW / OIHW) -----
def _conv2d_ref(x, w, b, pad):
    y = jax.lax.conv_general_dilated(
        x, w, window_strides=(1, 1), padding=[(pad, pad), (pad, pad)],
        dimension_numbers=("NCHW", "OIHW", "NCHW"))
    return y + b[None, :, None, None]


def inception_reference(x, p, clip=False):
    a = p["alphas"]
    x0 = _prelu(_conv2d_ref(x, p["w0"], p["b0"], 0), a[0])
    t1 = _prelu(_conv2d_ref(x, p["w1a"], p["b1a"], 0), a[1])
    x1 = _prelu(_conv2d_ref(t1, p["w1b"], p["b1b"], 1), a[2])
    x3 = _prelu(_conv2d_ref(x, p["w3"], p["b3"], 0), a[5])
    if not clip:
        t2 = _prelu(_conv2d_ref(x, p["w2a"], p["b2a"], 0), a[3])
        x2 = _prelu(_conv2d_ref(t2, p["w2b"], p["b2b"], 2), a[4])
        return jnp.concatenate([x0, x1, x2, x3], axis=1)
    return jnp.concatenate([x0, x1, x3], axis=1)


if __name__ == "__main__":
    key = jax.random.PRNGKey(0)
    kx, kp = jax.random.split(key)
    N, Cin, H, W, Cout = 2, 4, 16, 16, 8

    x = jax.random.normal(kx, (N, Cin, H, W), jnp.float32)
    params = init_params(kp, Cin, Cout)

    out = jax.block_until_ready(inception_block(x, params, clip=False))
    assert out.shape == (N, 4 * Cout, H, W), out.shape
    ref = inception_reference(x, params, clip=False)
    max_err = float(jnp.max(jnp.abs(out - ref)))
    assert jnp.allclose(out, ref, atol=1e-4, rtol=1e-4), max_err

    out_c = jax.block_until_ready(inception_block(x, params, clip=True))
    assert out_c.shape == (N, 3 * Cout, H, W), out_c.shape
    ref_c = inception_reference(x, params, clip=True)
    max_err_c = float(jnp.max(jnp.abs(out_c - ref_c)))
    assert jnp.allclose(out_c, ref_c, atol=1e-4, rtol=1e-4), max_err_c

    print("KERNEL_OK")
</pallas_src>

<mosaic_0001>
module attributes {stable_mosaic.version = 11 : i64} {
  func.func @_inception_kernel(%arg0: i32, %arg1: memref<4x512xf32, #tpu.memory_space<vmem>>, %arg2: memref<32x4xf32, #tpu.memory_space<vmem>>, %arg3: memref<32x1xf32, #tpu.memory_space<vmem>>, %arg4: memref<32x1xf32, #tpu.memory_space<vmem>>, %arg5: memref<8x72xf32, #tpu.memory_space<vmem>>, %arg6: memref<8x1xf32, #tpu.memory_space<vmem>>, %arg7: memref<8x1xf32, #tpu.memory_space<vmem>>, %arg8: memref<25x1x512xf32, #tpu.memory_space<vmem>>, %arg9: memref<8x200xf32, #tpu.memory_space<vmem>>, %arg10: memref<8x1xf32, #tpu.memory_space<vmem>>, %arg11: memref<8x1xf32, #tpu.memory_space<vmem>>, %arg12: memref<32x512xf32, #tpu.memory_space<vmem>>, %arg13: memref<72x512xf32, #tpu.memory_space<vmem>>, %arg14: memref<200x512xf32, #tpu.memory_space<vmem>>) attributes {dimension_semantics = [#tpu.dimension_semantics<parallel>], iteration_bounds = array<i64: 1>, scalar_prefetch = 0 : i64, scratch_operands = 2 : i64, tpu.core_type = #tpu.core_type<tc>, window_params = [{transform_indices = @transform_0, window_bounds = array<i64: 4, 512>}, {pipeline_mode = #tpu.pipeline_mode<synchronous>, transform_indices = @transform_1, window_bounds = array<i64: 32, 4>}, {pipeline_mode = #tpu.pipeline_mode<synchronous>, transform_indices = @transform_2, window_bounds = array<i64: 32, 1>}, {pipeline_mode = #tpu.pipeline_mode<synchronous>, transform_indices = @transform_3, window_bounds = array<i64: 32, 1>}, {pipeline_mode = #tpu.pipeline_mode<synchronous>, transform_indices = @transform_4, window_bounds = array<i64: 8, 72>}, {pipeline_mode = #tpu.pipeline_mode<synchronous>, transform_indices = @transform_5, window_bounds = array<i64: 8, 1>}, {pipeline_mode = #tpu.pipeline_mode<synchronous>, transform_indices = @transform_6, window_bounds = array<i64: 8, 1>}, {pipeline_mode = #tpu.pipeline_mode<synchronous>, transform_indices = @transform_7, window_bounds = array<i64: 25, 1, 512>}, {pipeline_mode = #tpu.pipeline_mode<synchronous>, transform_indices = @transform_8, window_bounds = array<i64: 8, 200>}, {pipeline_mode = #tpu.pipeline_mode<synchronous>, transform_indices = @transform_9, window_bounds = array<i64: 8, 1>}, {pipeline_mode = #tpu.pipeline_mode<synchronous>, transform_indices = @transform_10, window_bounds = array<i64: 8, 1>}, {transform_indices = @transform_11, window_bounds = array<i64: 32, 512>}]} {
    %c0 = arith.constant 0 : index
    %c0_0 = arith.constant 0 : index
    %0 = vector.load %arg1[%c0, %c0_0] : memref<4x512xf32, #tpu.memory_space<vmem>>, vector<4x512xf32>
    %c0_1 = arith.constant 0 : index
    %c0_2 = arith.constant 0 : index
    %1 = vector.load %arg2[%c0_1, %c0_2] : memref<32x4xf32, #tpu.memory_space<vmem>>, vector<32x4xf32>
    %cst = arith.constant dense<0.000000e+00> : vector<32x512xf32>
    %2 = tpu.matmul %1, %0, %cst {dimension_numbers = #tpu.dot_dimension_numbers<[1], [0], [0], [1], [0, 0, 1, 1], [], []>} : vector<32x4xf32>, vector<4x512xf32>, vector<32x512xf32> -> vector<32x512xf32>
    %c0_3 = arith.constant 0 : index
    %c0_4 = arith.constant 0 : index
    %3 = vector.load %arg3[%c0_3, %c0_4] : memref<32x1xf32, #tpu.memory_space<vmem>>, vector<32x1xf32>
    %4 = vector.broadcast %3 : vector<32x1xf32> to vector<32x512xf32>
    %5 = arith.addf %2, %4 : vector<32x512xf32>
    %cst_5 = arith.constant 0.000000e+00 : f32
    %6 = vector.broadcast %cst_5 : f32 to vector<32x512xf32>
    %7 = arith.cmpf ogt, %5, %6 : vector<32x512xf32>
    %c0_6 = arith.constant 0 : index
    %c0_7 = arith.constant 0 : index
    %8 = vector.load %arg4[%c0_6, %c0_7] : memref<32x1xf32, #tpu.memory_space<vmem>>, vector<32x1xf32>
    %9 = vector.broadcast %8 : vector<32x1xf32> to vector<32x512xf32>
    %10 = arith.mulf %9, %5 : vector<32x512xf32>
    %11 = arith.select %7, %5, %10 : vector<32x512xi1>, vector<32x512xf32>
    %12 = vector.extract_strided_slice %11 {offsets = [0, 0], sizes = [8, 512], strides = [1, 1]} : vector<32x512xf32> to vector<8x512xf32>
    %c0_8 = arith.constant 0 : index
    %c0_9 = arith.constant 0 : index
    %13 = vector.load %arg12[%c0_8, %c0_9] : memref<32x512xf32, #tpu.memory_space<vmem>>, vector<8x512xf32>
    tpu.vector_store %arg12[%c0_8, %c0_9], %12 {strides = array<i32>} : memref<32x512xf32, #tpu.memory_space<vmem>>, vector<8x512xf32>,
    %14 = vector.extract_strided_slice %11 {offsets = [24, 0], sizes = [8, 512], strides = [1, 1]} : vector<32x512xf32> to vector<8x512xf32>
    %c24 = arith.constant 24 : index
    %c0_10 = arith.constant 0 : index
    %15 = vector.load %arg12[%c24, %c0_10] : memref<32x512xf32, #tpu.memory_space<vmem>>, vector<8x512xf32>
    tpu.vector_store %arg12[%c24, %c0_10], %14 {strides = array<i32>} : memref<32x512xf32, #tpu.memory_space<vmem>>, vector<8x512xf32>,
    %16 = vector.extract_strided_slice %11 {offsets = [8, 0], sizes = [8, 512], strides = [1, 1]} : vector<32x512xf32> to vector<8x512xf32>
    %c17_i32 = arith.constant 17 : i32
    %17 = tpu.dynamic_rotate %16 by %c17_i32 dim 1 : vector<8x512xf32>, i32 -> vector<8x512xf32>
    %c6 = arith.constant 6 : index
    %c0_11 = arith.constant 0 : index
    %c0_12 = arith.constant 0 : index
    %18 = vector.load %arg8[%c6, %c0_11, %c0_12] : memref<25x1x512xf32, #tpu.memory_space<vmem>>, vector<1x1x512xf32>
    %19 = vector.shape_cast %18 : vector<1x1x512xf32> to vector<1x512xf32>
    %20 = vector.broadcast %19 : vector<1x512xf32> to vector<8x512xf32>
    %21 = arith.mulf %17, %20 : vector<8x512xf32>
    %c0_13 = arith.constant 0 : index
    %c0_14 = arith.constant 0 : index
    %22 = vector.load %arg13[%c0_13, %c0_14] : memref<72x512xf32, #tpu.memory_space<vmem>>, vector<8x512xf32>
    tpu.vector_store %arg13[%c0_13, %c0_14], %21 {strides = array<i32>} : memref<72x512xf32, #tpu.memory_space<vmem>>, vector<8x512xf32>,
    %c16_i32 = arith.constant 16 : i32
    %23 = tpu.dynamic_rotate %16 by %c16_i32 dim 1 : vector<8x512xf32>, i32 -> vector<8x512xf32>
    %c7 = arith.constant 7 : index
    %c0_15 = arith.constant 0 : index
    %c0_16 = arith.constant 0 : index
    %24 = vector.load %arg8[%c7, %c0_15, %c0_16] : memref<25x1x512xf32, #tpu.memory_space<vmem>>, vector<1x1x512xf32>
    %25 = vector.shape_cast %24 : vector<1x1x512xf32> to vector<1x512xf32>
    %26 = vector.broadcast %25 : vector<1x512xf32> to vector<8x512xf32>
    %27 = arith.mulf %23, %26 : vector<8x512xf32>
    %c8 = arith.constant 8 : index
    %c0_17 = arith.constant 0 : index
    %28 = vector.load %arg13[%c8, %c0_17] : memref<72x512xf32, #tpu.memory_space<vmem>>, vector<8x512xf32>
    tpu.vector_store %arg13[%c8, %c0_17], %27 {strides = array<i32>} : memref<72x512xf32, #tpu.memory_space<vmem>>, vector<8x512xf32>,
    %c15_i32 = arith.constant 15 : i32
    %29 = tpu.dynamic_rotate %16 by %c15_i32 dim 1 : vector<8x512xf32>, i32 -> vector<8x512xf32>
    %c8_18 = arith.constant 8 : index
    %c0_19 = arith.constant 0 : index
    %c0_20 = arith.constant 0 : index
    %30 = vector.load %arg8[%c8_18, %c0_19, %c0_20] : memref<25x1x512xf32, #tpu.memory_space<vmem>>, vector<1x1x512xf32>
    %31 = vector.shape_cast %30 : vector<1x1x512xf32> to vector<1x512xf32>
    %32 = vector.broadcast %31 : vector<1x512xf32> to vector<8x512xf32>
    %33 = arith.mulf %29, %32 : vector<8x512xf32>
    %c16 = arith.constant 16 : index
    %c0_21 = arith.constant 0 : index
    %34 = vector.load %arg13[%c16, %c0_21] : memref<72x512xf32, #tpu.memory_space<vmem>>, vector<8x512xf32>
    tpu.vector_store %arg13[%c16, %c0_21], %33 {strides = array<i32>} : memref<72x512xf32, #tpu.memory_space<vmem>>, vector<8x512xf32>,
    %c1_i32 = arith.constant 1 : i32
    %35 = tpu.dynamic_rotate %16 by %c1_i32 dim 1 : vector<8x512xf32>, i32 -> vector<8x512xf32>
    %c11 = arith.constant 11 : index
    %c0_22 = arith.constant 0 : index
    %c0_23 = arith.constant 0 : index
    %36 = vector.load %arg8[%c11, %c0_22, %c0_23] : memref<25x1x512xf32, #tpu.memory_space<vmem>>, vector<1x1x512xf32>
    %37 = vector.shape_cast %36 : vector<1x1x512xf32> to vector<1x512xf32>
    %38 = vector.broadcast %37 : vector<1x512xf32> to vector<8x512xf32>
    %39 = arith.mulf %35, %38 : vector<8x512xf32>
    %c24_24 = arith.constant 24 : index
    %c0_25 = arith.constant 0 : index
    %40 = vector.load %arg13[%c24_24, %c0_25] : memref<72x512xf32, #tpu.memory_space<vmem>>, vector<8x512xf32>
    tpu.vector_store %arg13[%c24_24, %c0_25], %39 {strides = array<i32>} : memref<72x512xf32, #tpu.memory_space<vmem>>, vector<8x512xf32>,
    %c12 = arith.constant 12 : index
    %c0_26 = arith.constant 0 : index
    %c0_27 = arith.constant 0 : index
    %41 = vector.load %arg8[%c12, %c0_26, %c0_27] : memref<25x1x512xf32, #tpu.memory_space<vmem>>, vector<1x1x512xf32>
    %42 = vector.shape_cast %41 : vector<1x1x512xf32> to vector<1x512xf32>
    %43 = vector.broadcast %42 : vector<1x512xf32> to vector<8x512xf32>
    %44 = arith.mulf %16, %43 : vector<8x512xf32>
    %c32 = arith.constant 32 : index
    %c0_28 = arith.constant 0 : index
    %45 = vector.load %arg13[%c32, %c0_28] : memref<72x512xf32, #tpu.memory_space<vmem>>, vector<8x512xf32>
    tpu.vector_store %arg13[%c32, %c0_28], %44 {strides = array<i32>} : memref<72x512xf32, #tpu.memory_space<vmem>>, vector<8x512xf32>,
    %c511_i32 = arith.constant 511 : i32
    %46 = tpu.dynamic_rotate %16 by %c511_i32 dim 1 : vector<8x512xf32>, i32 -> vector<8x512xf32>
    %c13 = arith.constant 13 : index
    %c0_29 = arith.constant 0 : index
    %c0_30 = arith.constant 0 : index
    %47 = vector.load %arg8[%c13, %c0_29, %c0_30] : memref<25x1x512xf32, #tpu.memory_space<vmem>>, vector<1x1x512xf32>
    %48 = vector.shape_cast %47 : vector<1x1x512xf32> to vector<1x512xf32>
    %49 = vector.broadcast %48 : vector<1x512xf32> to vector<8x512xf32>
    %50 = arith.mulf %46, %49 : vector<8x512xf32>
    %c40 = arith.constant 40 : index
    %c0_31 = arith.constant 0 : index
    %51 = vector.load %arg13[%c40, %c0_31] : memref<72x512xf32, #tpu.memory_space<vmem>>, vector<8x512xf32>
    tpu.vector_store %arg13[%c40, %c0_31], %50 {strides = array<i32>} : memref<72x512xf32, #tpu.memory_space<vmem>>, vector<8x512xf32>,
    %c497_i32 = arith.constant 497 : i32
    %52 = tpu.dynamic_rotate %16 by %c497_i32 dim 1 : vector<8x512xf32>, i32 -> vector<8x512xf32>
    %c16_32 = arith.constant 16 : index
    %c0_33 = arith.constant 0 : index
    %c0_34 = arith.constant 0 : index
    %53 = vector.load %arg8[%c16_32, %c0_33, %c0_34] : memref<25x1x512xf32, #tpu.memory_space<vmem>>, vector<1x1x512xf32>
    %54 = vector.shape_cast %53 : vector<1x1x512xf32> to vector<1x512xf32>
    %55 = vector.broadcast %54 : vector<1x512xf32> to vector<8x512xf32>
    %56 = arith.mulf %52, %55 : vector<8x512xf32>
    %c48 = arith.constant 48 : index
    %c0_35 = arith.constant 0 : index
    %57 = vector.load %arg13[%c48, %c0_35] : memref<72x512xf32, #tpu.memory_space<vmem>>, vector<8x512xf32>
    tpu.vector_store %arg13[%c48, %c0_35], %56 {strides = array<i32>} : memref<72x512xf32, #tpu.memory_space<vmem>>, vector<8x512xf32>,
    %c496_i32 = arith.constant 496 : i32
    %58 = tpu.dynamic_rotate %16 by %c496_i32 dim 1 : vector<8x512xf32>, i32 -> vector<8x512xf32>
    %c17 = arith.constant 17 : index
    %c0_36 = arith.constant 0 : index
    %c0_37 = arith.constant 0 : index
    %59 = vector.load %arg8[%c17, %c0_36, %c0_37] : memref<25x1x512xf32, #tpu.memory_space<vmem>>, vector<1x1x512xf32>
    %60 = vector.shape_cast %59 : vector<1x1x512xf32> to vector<1x512xf32>
    %61 = vector.broadcast %60 : vector<1x512xf32> to vector<8x512xf32>
    %62 = arith.mulf %58, %61 : vector<8x512xf32>
    %c56 = arith.constant 56 : index
    %c0_38 = arith.constant 0 : index
    %63 = vector.load %arg13[%c56, %c0_38] : memref<72x512xf32, #tpu.memory_space<vmem>>, vector<8x512xf32>
    tpu.vector_store %arg13[%c56, %c0_38], %62 {strides = array<i32>} : memref<72x512xf32, #tpu.memory_space<vmem>>, vector<8x512xf32>,
    %c495_i32 = arith.constant 495 : i32
    %64 = tpu.dynamic_rotate %16 by %c495_i32 dim 1 : vector<8x512xf32>, i32 -> vector<8x512xf32>
    %c18 = arith.constant 18 : index
    %c0_39 = arith.constant 0 : index
    %c0_40 = arith.constant 0 : index
    %65 = vector.load %arg8[%c18, %c0_39, %c0_40] : memref<25x1x512xf32, #tpu.memory_space<vmem>>, vector<1x1x512xf32>
    %66 = vector.shape_cast %65 : vector<1x1x512xf32> to vector<1x512xf32>
    %67 = vector.broadcast %66 : vector<1x512xf32> to vector<8x512xf32>
    %68 = arith.mulf %64, %67 : vector<8x512xf32>
    %c64 = arith.constant 64 : index
    %c0_41 = arith.constant 0 : index
    %69 = vector.load %arg13[%c64, %c0_41] : memref<72x512xf32, #tpu.memory_space<vmem>>, vector<8x512xf32>
    tpu.vector_store %arg13[%c64, %c0_41], %68 {strides = array<i32>} : memref<72x512xf32, #tpu.memory_space<vmem>>, vector<8x512xf32>,
    %c0_42 = arith.constant 0 : index
    %c0_43 = arith.constant 0 : index
    %70 = vector.load %arg5[%c0_42, %c0_43] : memref<8x72xf32, #tpu.memory_space<vmem>>, vector<8x72xf32>
    %c0_44 = arith.constant 0 : index
    %c0_45 = arith.constant 0 : index
    %71 = vector.load %arg13[%c0_44, %c0_45] : memref<72x512xf32, #tpu.memory_space<vmem>>, vector<72x512xf32>
    %cst_46 = arith.constant dense<0.000000e+00> : vector<8x512xf32>
    %72 = tpu.matmul %70, %71, %cst_46 {dimension_numbers = #tpu.dot_dimension_numbers<[1], [0], [0], [1], [0, 0, 1, 1], [], []>} : vector<8x72xf32>, vector<72x512xf32>, vector<8x512xf32> -> vector<8x512xf32>
    %c0_47 = arith.constant 0 : index
    %c0_48 = arith.constant 0 : index
    %73 = vector.load %arg6[%c0_47, %c0_48] : memref<8x1xf32, #tpu.memory_space<vmem>>, vector<8x1xf32>
    %74 = vector.broadcast %73 : vector<8x1xf32> to vector<8x512xf32>
    %75 = arith.addf %72, %74 : vector<8x512xf32>
    %c0_49 = arith.constant 0 : index
    %c0_50 = arith.constant 0 : index
    %76 = vector.load %arg7[%c0_49, %c0_50] : memref<8x1xf32, #tpu.memory_space<vmem>>, vector<8x1xf32>
    %cst_51 = arith.constant 0.000000e+00 : f32
    %77 = vector.broadcast %cst_51 : f32 to vector<8x512xf32>
    %78 = arith.cmpf ogt, %75, %77 : vector<8x512xf32>
    %79 = vector.broadcast %76 : vector<8x1xf32> to vector<8x512xf32>
    %80 = arith.mulf %79, %75 : vector<8x512xf32>
    %81 = arith.select %78, %75, %80 : vector<8x512xi1>, vector<8x512xf32>
    %c8_52 = arith.constant 8 : index
    %c0_53 = arith.constant 0 : index
    %82 = vector.load %arg12[%c8_52, %c0_53] : memref<32x512xf32, #tpu.memory_space<vmem>>, vector<8x512xf32>
    tpu.vector_store %arg12[%c8_52, %c0_53], %81 {strides = array<i32>} : memref<32x512xf32, #tpu.memory_space<vmem>>, vector<8x512xf32>,
    %83 = vector.extract_strided_slice %11 {offsets = [16, 0], sizes = [8, 512], strides = [1, 1]} : vector<32x512xf32> to vector<8x512xf32>
    %c34_i32 = arith.constant 34 : i32
    %84 = tpu.dynamic_rotate %83 by %c34_i32 dim 1 : vector<8x512xf32>, i32 -> vector<8x512xf32>
    %c0_54 = arith.constant 0 : index
    %c0_55 = arith.constant 0 : index
    %c0_56 = arith.constant 0 : index
    %85 = vector.load %arg8[%c0_54, %c0_55, %c0_56] : memref<25x1x512xf32, #tpu.memory_space<vmem>>, vector<1x1x512xf32>
    %86 = vector.shape_cast %85 : vector<1x1x512xf32> to vector<1x512xf32>
    %87 = vector.broadcast %86 : vector<1x512xf32> to vector<8x512xf32>
    %88 = arith.mulf %84, %87 : vector<8x512xf32>
    %c0_57 = arith.constant 0 : index
    %c0_58 = arith.constant 0 : index
    %89 = vector.load %arg14[%c0_57, %c0_58] : memref<200x512xf32, #tpu.memory_space<vmem>>, vector<8x512xf32>
    tpu.vector_store %arg14[%c0_57, %c0_58], %88 {strides = array<i32>} : memref<200x512xf32, #tpu.memory_space<vmem>>, vector<8x512xf32>,
    %c33_i32 = arith.constant 33 : i32
    %90 = tpu.dynamic_rotate %83 by %c33_i32 dim 1 : vector<8x512xf32>, i32 -> vector<8x512xf32>
    %c1 = arith.constant 1 : index
    %c0_59 = arith.constant 0 : index
    %c0_60 = arith.constant 0 : index
    %91 = vector.load %arg8[%c1, %c0_59, %c0_60] : memref<25x1x512xf32, #tpu.memory_space<vmem>>, vector<1x1x512xf32>
    %92 = vector.shape_cast %91 : vector<1x1x512xf32> to vector<1x512xf32>
    %93 = vector.broadcast %92 : vector<1x512xf32> to vector<8x512xf32>
    %94 = arith.mulf %90, %93 : vector<8x512xf32>
    %c8_61 = arith.constant 8 : index
    %c0_62 = arith.constant 0 : index
    %95 = vector.load %arg14[%c8_61, %c0_62] : memref<200x512xf32, #tpu.memory_space<vmem>>, vector<8x512xf32>
    tpu.vector_store %arg14[%c8_61, %c0_62], %94 {strides = array<i32>} : memref<200x512xf32, #tpu.memory_space<vmem>>, vector<8x512xf32>,
    %c32_i32 = arith.constant 32 : i32
    %96 = tpu.dynamic_rotate %83 by %c32_i32 dim 1 : vector<8x512xf32>, i32 -> vector<8x512xf32>
    %c2 = arith.constant 2 : index
    %c0_63 = arith.constant 0 : index
    %c0_64 = arith.constant 0 : index
    %97 = vector.load %arg8[%c2, %c0_63, %c0_64] : memref<25x1x512xf32, #tpu.memory_space<vmem>>, vector<1x1x512xf32>
    %98 = vector.shape_cast %97 : vector<1x1x512xf32> to vector<1x512xf32>
    %99 = vector.broadcast %98 : vector<1x512xf32> to vector<8x512xf32>
    %100 = arith.mulf %96, %99 : vector<8x512xf32>
    %c16_65 = arith.constant 16 : index
    %c0_66 = arith.constant 0 : index
    %101 = vector.load %arg14[%c16_65, %c0_66] : memref<200x512xf32, #tpu.memory_space<vmem>>, vector<8x512xf32>
    tpu.vector_store %arg14[%c16_65, %c0_66], %100 {strides = array<i32>} : memref<200x512xf32, #tpu.memory_space<vmem>>, vector<8x512xf32>,
    %c31_i32 = arith.constant 31 : i32
    %102 = tpu.dynamic_rotate %83 by %c31_i32 dim 1 : vector<8x512xf32>, i32 -> vector<8x512xf32>
    %c3 = arith.constant 3 : index
    %c0_67 = arith.constant 0 : index
    %c0_68 = arith.constant 0 : index
    %103 = vector.load %arg8[%c3, %c0_67, %c0_68] : memref<25x1x512xf32, #tpu.memory_space<vmem>>, vector<1x1x512xf32>
    %104 = vector.shape_cast %103 : vector<1x1x512xf32> to vector<1x512xf32>
    %105 = vector.broadcast %104 : vector<1x512xf32> to vector<8x512xf32>
    %106 = arith.mulf %102, %105 : vector<8x512xf32>
    %c24_69 = arith.constant 24 : index
    %c0_70 = arith.constant 0 : index
    %107 = vector.load %arg14[%c24_69, %c0_70] : memref<200x512xf32, #tpu.memory_space<vmem>>, vector<8x512xf32>
    tpu.vector_store %arg14[%c24_69, %c0_70], %106 {strides = array<i32>} : memref<200x512xf32, #tpu.memory_space<vmem>>, vector<8x512xf32>,
    %c30_i32 = arith.constant 30 : i32
    %108 = tpu.dynamic_rotate %83 by %c30_i32 dim 1 : vector<8x512xf32>, i32 -> vector<8x512xf32>
    %c4 = arith.constant 4 : index
    %c0_71 = arith.constant 0 : index
    %c0_72 = arith.constant 0 : index
    %109 = vector.load %arg8[%c4, %c0_71, %c0_72] : memref<25x1x512xf32, #tpu.memory_space<vmem>>, vector<1x1x512xf32>
    %110 = vector.shape_cast %109 : vector<1x1x512xf32> to vector<1x512xf32>
    %111 = vector.broadcast %110 : vector<1x512xf32> to vector<8x512xf32>
    %112 = arith.mulf %108, %111 : vector<8x512xf32>
    %c32_73 = arith.constant 32 : index
    %c0_74 = arith.constant 0 : index
    %113 = vector.load %arg14[%c32_73, %c0_74] : memref<200x512xf32, #tpu.memory_space<vmem>>, vector<8x512xf32>
    tpu.vector_store %arg14[%c32_73, %c0_74], %112 {strides = array<i32>} : memref<200x512xf32, #tpu.memory_space<vmem>>, vector<8x512xf32>,
    %c18_i32 = arith.constant 18 : i32
    %114 = tpu.dynamic_rotate %83 by %c18_i32 dim 1 : vector<8x512xf32>, i32 -> vector<8x512xf32>
    %c5 = arith.constant 5 : index
    %c0_75 = arith.constant 0 : index
    %c0_76 = arith.constant 0 : index
    %115 = vector.load %arg8[%c5, %c0_75, %c0_76] : memref<25x1x512xf32, #tpu.memory_space<vmem>>, vector<1x1x512xf32>
    %116 = vector.shape_cast %115 : vector<1x1x512xf32> to vector<1x512xf32>
    %117 = vector.broadcast %116 : vector<1x512xf32> to vector<8x512xf32>
    %118 = arith.mulf %114, %117 : vector<8x512xf32>
    %c40_77 = arith.constant 40 : index
    %c0_78 = arith.constant 0 : index
    %119 = vector.load %arg14[%c40_77, %c0_78] : memref<200x512xf32, #tpu.memory_space<vmem>>, vector<8x512xf32>
    tpu.vector_store %arg14[%c40_77, %c0_78], %118 {strides = array<i32>} : memref<200x512xf32, #tpu.memory_space<vmem>>, vector<8x512xf32>,
    %c17_i32_79 = arith.constant 17 : i32
    %120 = tpu.dynamic_rotate %83 by %c17_i32_79 dim 1 : vector<8x512xf32>, i32 -> vector<8x512xf32>
    %c6_80 = arith.constant 6 : index
    %c0_81 = arith.constant 0 : index
    %c0_82 = arith.constant 0 : index
    %121 = vector.load %arg8[%c6_80, %c0_81, %c0_82] : memref<25x1x512xf32, #tpu.memory_space<vmem>>, vector<1x1x512xf32>
    %122 = vector.shape_cast %121 : vector<1x1x512xf32> to vector<1x512xf32>
    %123 = vector.broadcast %122 : vector<1x512xf32> to vector<8x512xf32>
    %124 = arith.mulf %120, %123 : vector<8x512xf32>
    %c48_83 = arith.constant 48 : index
    %c0_84 = arith.constant 0 : index
    %125 = vector.load %arg14[%c48_83, %c0_84] : memref<200x512xf32, #tpu.memory_space<vmem>>, vector<8x512xf32>
    tpu.vector_store %arg14[%c48_83, %c0_84], %124 {strides = array<i32>} : memref<200x512xf32, #tpu.memory_space<vmem>>, vector<8x512xf32>,
    %c16_i32_85 = arith.constant 16 : i32
    %126 = tpu.dynamic_rotate %83 by %c16_i32_85 dim 1 : vector<8x512xf32>, i32 -> vector<8x512xf32>
    %c7_86 = arith.constant 7 : index
    %c0_87 = arith.constant 0 : index
    %c0_88 = arith.constant 0 : index
    %127 = vector.load %arg8[%c7_86, %c0_87, %c0_88] : memref<25x1x512xf32, #tpu.memory_space<vmem>>, vector<1x1x512xf32>
    %128 = vector.shape_cast %127 : vector<1x1x512xf32> to vector<1x512xf32>
    %129 = vector.broadcast %128 : vector<1x512xf32> to vector<8x512xf32>
    %130 = arith.mulf %126, %129 : vector<8x512xf32>
    %c56_89 = arith.constant 56 : index
    %c0_90 = arith.constant 0 : index
    %131 = vector.load %arg14[%c56_89, %c0_90] : memref<200x512xf32, #tpu.memory_space<vmem>>, vector<8x512xf32>
    tpu.vector_store %arg14[%c56_89, %c0_90], %130 {strides = array<i32>} : memref<200x512xf32, #tpu.memory_space<vmem>>, vector<8x512xf32>,
    %c15_i32_91 = arith.constant 15 : i32
    %132 = tpu.dynamic_rotate %83 by %c15_i32_91 dim 1 : vector<8x512xf32>, i32 -> vector<8x512xf32>
    %c8_92 = arith.constant 8 : index
    %c0_93 = arith.constant 0 : index
    %c0_94 = arith.constant 0 : index
    %133 = vector.load %arg8[%c8_92, %c0_93, %c0_94] : memref<25x1x512xf32, #tpu.memory_space<vmem>>, vector<1x1x512xf32>
    %134 = vector.shape_cast %133 : vector<1x1x512xf32> to vector<1x512xf32>
    %135 = vector.broadcast %134 : vector<1x512xf32> to vector<8x512xf32>
    %136 = arith.mulf %132, %135 : vector<8x512xf32>
    %c64_95 = arith.constant 64 : index
    %c0_96 = arith.constant 0 : index
    %137 = vector.load %arg14[%c64_95, %c0_96] : memref<200x512xf32, #tpu.memory_space<vmem>>, vector<8x512xf32>
    tpu.vector_store %arg14[%c64_95, %c0_96], %136 {strides = array<i32>} : memref<200x512xf32, #tpu.memory_space<vmem>>, vector<8x512xf32>,
    %c14_i32 = arith.constant 14 : i32
    %138 = tpu.dynamic_rotate %83 by %c14_i32 dim 1 : vector<8x512xf32>, i32 -> vector<8x512xf32>
    %c9 = arith.constant 9 : index
    %c0_97 = arith.constant 0 : index
    %c0_98 = arith.constant 0 : index
    %139 = vector.load %arg8[%c9, %c0_97, %c0_98] : memref<25x1x512xf32, #tpu.memory_space<vmem>>, vector<1x1x512xf32>
    %140 = vector.shape_cast %139 : vector<1x1x512xf32> to vector<1x512xf32>
    %141 = vector.broadcast %140 : vector<1x512xf32> to vector<8x512xf32>
    %142 = arith.mulf %138, %141 : vector<8x512xf32>
    %c72 = arith.constant 72 : index
    %c0_99 = arith.constant 0 : index
    %143 = vector.load %arg14[%c72, %c0_99] : memref<200x512xf32, #tpu.memory_space<vmem>>, vector<8x512xf32>
    tpu.vector_store %arg14[%c72, %c0_99], %142 {strides = array<i32>} : memref<200x512xf32, #tpu.memory_space<vmem>>, vector<8x512xf32>,
    %c2_i32 = arith.constant 2 : i32
    %144 = tpu.dynamic_rotate %83 by %c2_i32 dim 1 : vector<8x512xf32>, i32 -> vector<8x512xf32>
    %c10 = arith.constant 10 : index
    %c0_100 = arith.constant 0 : index
    %c0_101 = arith.constant 0 : index
    %145 = vector.load %arg8[%c10, %c0_100, %c0_101] : memref<25x1x512xf32, #tpu.memory_space<vmem>>, vector<1x1x512xf32>
    %146 = vector.shape_cast %145 : vector<1x1x512xf32> to vector<1x512xf32>
    %147 = vector.broadcast %146 : vector<1x512xf32> to vector<8x512xf32>
    %148 = arith.mulf %144, %147 : vector<8x512xf32>
    %c80 = arith.constant 80 : index
    %c0_102 = arith.constant 0 : index
    %149 = vector.load %arg14[%c80, %c0_102] : memref<200x512xf32, #tpu.memory_space<vmem>>, vector<8x512xf32>
    tpu.vector_store %arg14[%c80, %c0_102], %148 {strides = array<i32>} : memref<200x512xf32, #tpu.memory_space<vmem>>, vector<8x512xf32>,
    %c1_i32_103 = arith.constant 1 : i32
    %150 = tpu.dynamic_rotate %83 by %c1_i32_103 dim 1 : vector<8x512xf32>, i32 -> vector<8x512xf32>
    %c11_104 = arith.constant 11 : index
    %c0_105 = arith.constant 0 : index
    %c0_106 = arith.constant 0 : index
    %151 = vector.load %arg8[%c11_104, %c0_105, %c0_106] : memref<25x1x512xf32, #tpu.memory_space<vmem>>, vector<1x1x512xf32>
    %152 = vector.shape_cast %151 : vector<1x1x512xf32> to vector<1x512xf32>
    %153 = vector.broadcast %152 : vector<1x512xf32> to vector<8x512xf32>
    %154 = arith.mulf %150, %153 : vector<8x512xf32>
    %c88 = arith.constant 88 : index
    %c0_107 = arith.constant 0 : index
    %155 = vector.load %arg14[%c88, %c0_107] : memref<200x512xf32, #tpu.memory_space<vmem>>, vector<8x512xf32>
    tpu.vector_store %arg14[%c88, %c0_107], %154 {strides = array<i32>} : memref<200x512xf32, #tpu.memory_space<vmem>>, vector<8x512xf32>,
    %c12_108 = arith.constant 12 : index
    %c0_109 = arith.constant 0 : index
    %c0_110 = arith.constant 0 : index
    %156 = vector.load %arg8[%c12_108, %c0_109, %c0_110] : memref<25x1x512xf32, #tpu.memory_space<vmem>>, vector<1x1x512xf32>
    %157 = vector.shape_cast %156 : vector<1x1x512xf32> to vector<1x512xf32>
    %158 = vector.broadcast %157 : vector<1x512xf32> to vector<8x512xf32>
    %159 = arith.mulf %83, %158 : vector<8x512xf32>
    %c96 = arith.constant 96 : index
    %c0_111 = arith.constant 0 : index
    %160 = vector.load %arg14[%c96, %c0_111] : memref<200x512xf32, #tpu.memory_space<vmem>>, vector<8x512xf32>
    tpu.vector_store %arg14[%c96, %c0_111], %159 {strides = array<i32>} : memref<200x512xf32, #tpu.memory_space<vmem>>, vector<8x512xf32>,
    %c511_i32_112 = arith.constant 511 : i32
    %161 = tpu.dynamic_rotate %83 by %c511_i32_112 dim 1 : vector<8x512xf32>, i32 -> vector<8x512xf32>
    %c13_113 = arith.constant 13 : index
    %c0_114 = arith.constant 0 : index
    %c0_115 = arith.constant 0 : index
    %162 = vector.load %arg8[%c13_113, %c0_114, %c0_115] : memref<25x1x512xf32, #tpu.memory_space<vmem>>, vector<1x1x512xf32>
    %163 = vector.shape_cast %162 : vector<1x1x512xf32> to vector<1x512xf32>
    %164 = vector.broadcast %163 : vector<1x512xf32> to vector<8x512xf32>
    %165 = arith.mulf %161, %164 : vector<8x512xf32>
    %c104 = arith.constant 104 : index
    %c0_116 = arith.constant 0 : index
    %166 = vector.load %arg14[%c104, %c0_116] : memref<200x512xf32, #tpu.memory_space<vmem>>, vector<8x512xf32>
    tpu.vector_store %arg14[%c104, %c0_116], %165 {strides = array<i32>} : memref<200x512xf32, #tpu.memory_space<vmem>>, vector<8x512xf32>,
    %c510_i32 = arith.constant 510 : i32
    %167 = tpu.dynamic_rotate %83 by %c510_i32 dim 1 : vector<8x512xf32>, i32 -> vector<8x512xf32>
    %c14 = arith.constant 14 : index
    %c0_117 = arith.constant 0 : index
    %c0_118 = arith.constant 0 : index
    %168 = vector.load %arg8[%c14, %c0_117, %c0_118] : memref<25x1x512xf32, #tpu.memory_space<vmem>>, vector<1x1x512xf32>
    %169 = vector.shape_cast %168 : vector<1x1x512xf32> to vector<1x512xf32>
    %170 = vector.broadcast %169 : vector<1x512xf32> to vector<8x512xf32>
    %171 = arith.mulf %167, %170 : vector<8x512xf32>
    %c112 = arith.constant 112 : index
    %c0_119 = arith.constant 0 : index
    %172 = vector.load %arg14[%c112, %c0_119] : memref<200x512xf32, #tpu.memory_space<vmem>>, vector<8x512xf32>
    tpu.vector_store %arg14[%c112, %c0_119], %171 {strides = array<i32>} : memref<200x512xf32, #tpu.memory_space<vmem>>, vector<8x512xf32>,
    %c498_i32 = arith.constant 498 : i32
    %173 = tpu.dynamic_rotate %83 by %c498_i32 dim 1 : vector<8x512xf32>, i32 -> vector<8x512xf32>
    %c15 = arith.constant 15 : index
    %c0_120 = arith.constant 0 : index
    %c0_121 = arith.constant 0 : index
    %174 = vector.load %arg8[%c15, %c0_120, %c0_121] : memref<25x1x512xf32, #tpu.memory_space<vmem>>, vector<1x1x512xf32>
    %175 = vector.shape_cast %174 : vector<1x1x512xf32> to vector<1x512xf32>
    %176 = vector.broadcast %175 : vector<1x512xf32> to vector<8x512xf32>
    %177 = arith.mulf %173, %176 : vector<8x512xf32>
    %c120 = arith.constant 120 : index
    %c0_122 = arith.constant 0 : index
    %178 = vector.load %arg14[%c120, %c0_122] : memref<200x512xf32, #tpu.memory_space<vmem>>, vector<8x512xf32>
    tpu.vector_store %arg14[%c120, %c0_122], %177 {strides = array<i32>} : memref<200x512xf32, #tpu.memory_space<vmem>>, vector<8x512xf32>,
    %c497_i32_123 = arith.constant 497 : i32
    %179 = tpu.dynamic_rotate %83 by %c497_i32_123 dim 1 : vector<8x512xf32>, i32 -> vector<8x512xf32>
    %c16_124 = arith.constant 16 : index
    %c0_125 = arith.constant 0 : index
    %c0_126 = arith.constant 0 : index
    %180 = vector.load %arg8[%c16_124, %c0_125, %c0_126] : memref<25x1x512xf32, #tpu.memory_space<vmem>>, vector<1x1x512xf32>
    %181 = vector.shape_cast %180 : vector<1x1x512xf32> to vector<1x512xf32>
    %182 = vector.broadcast %181 : vector<1x512xf32> to vector<8x512xf32>
    %183 = arith.mulf %179, %182 : vector<8x512xf32>
    %c128 = arith.constant 128 : index
    %c0_127 = arith.constant 0 : index
    %184 = vector.load %arg14[%c128, %c0_127] : memref<200x512xf32, #tpu.memory_space<vmem>>, vector<8x512xf32>
    tpu.vector_store %arg14[%c128, %c0_127], %183 {strides = array<i32>} : memref<200x512xf32, #tpu.memory_space<vmem>>, vector<8x512xf32>,
    %c496_i32_128 = arith.constant 496 : i32
    %185 = tpu.dynamic_rotate %83 by %c496_i32_128 dim 1 : vector<8x512xf32>, i32 -> vector<8x512xf32>
    %c17_129 = arith.constant 17 : index
    %c0_130 = arith.constant 0 : index
    %c0_131 = arith.constant 0 : index
    %186 = vector.load %arg8[%c17_129, %c0_130, %c0_131] : memref<25x1x512xf32, #tpu.memory_space<vmem>>, vector<1x1x512xf32>
    %187 = vector.shape_cast %186 : vector<1x1x512xf32> to vector<1x512xf32>
    %188 = vector.broadcast %187 : vector<1x512xf32> to vector<8x512xf32>
    %189 = arith.mulf %185, %188 : vector<8x512xf32>
    %c136 = arith.constant 136 : index
    %c0_132 = arith.constant 0 : index
    %190 = vector.load %arg14[%c136, %c0_132] : memref<200x512xf32, #tpu.memory_space<vmem>>, vector<8x512xf32>
    tpu.vector_store %arg14[%c136, %c0_132], %189 {strides = array<i32>} : memref<200x512xf32, #tpu.memory_space<vmem>>, vector<8x512xf32>,
    %c495_i32_133 = arith.constant 495 : i32
    %191 = tpu.dynamic_rotate %83 by %c495_i32_133 dim 1 : vector<8x512xf32>, i32 -> vector<8x512xf32>
    %c18_134 = arith.constant 18 : index
    %c0_135 = arith.constant 0 : index
    %c0_136 = arith.constant 0 : index
    %192 = vector.load %arg8[%c18_134, %c0_135, %c0_136] : memref<25x1x512xf32, #tpu.memory_space<vmem>>, vector<1x1x512xf32>
    %193 = vector.shape_cast %192 : vector<1x1x512xf32> to vector<1x512xf32>
    %194 = vector.broadcast %193 : vector<1x512xf32> to vector<8x512xf32>
    %195 = arith.mulf %191, %194 : vector<8x512xf32>
    %c144 = arith.constant 144 : index
    %c0_137 = arith.constant 0 : index
    %196 = vector.load %arg14[%c144, %c0_137] : memref<200x512xf32, #tpu.memory_space<vmem>>, vector<8x512xf32>
    tpu.vector_store %arg14[%c144, %c0_137], %195 {strides = array<i32>} : memref<200x512xf32, #tpu.memory_space<vmem>>, vector<8x512xf32>,
    %c494_i32 = arith.constant 494 : i32
    %197 = tpu.dynamic_rotate %83 by %c494_i32 dim 1 : vector<8x512xf32>, i32 -> vector<8x512xf32>
    %c19 = arith.constant 19 : index
    %c0_138 = arith.constant 0 : index
    %c0_139 = arith.constant 0 : index
    %198 = vector.load %arg8[%c19, %c0_138, %c0_139] : memref<25x1x512xf32, #tpu.memory_space<vmem>>, vector<1x1x512xf32>
    %199 = vector.shape_cast %198 : vector<1x1x512xf32> to vector<1x512xf32>
    %200 = vector.broadcast %199 : vector<1x512xf32> to vector<8x512xf32>
    %201 = arith.mulf %197, %200 : vector<8x512xf32>
    %c152 = arith.constant 152 : index
    %c0_140 = arith.constant 0 : index
    %202 = vector.load %arg14[%c152, %c0_140] : memref<200x512xf32, #tpu.memory_space<vmem>>, vector<8x512xf32>
    tpu.vector_store %arg14[%c152, %c0_140], %201 {strides = array<i32>} : memref<200x512xf32, #tpu.memory_space<vmem>>, vector<8x512xf32>,
    %c482_i32 = arith.constant 482 : i32
    %203 = tpu.dynamic_rotate %83 by %c482_i32 dim 1 : vector<8x512xf32>, i32 -> vector<8x512xf32>
    %c20 = arith.constant 20 : index
    %c0_141 = arith.constant 0 : index
    %c0_142 = arith.constant 0 : index
    %204 = vector.load %arg8[%c20, %c0_141, %c0_142] : memref<25x1x512xf32, #tpu.memory_space<vmem>>, vector<1x1x512xf32>
    %205 = vector.shape_cast %204 : vector<1x1x512xf32> to vector<1x512xf32>
    %206 = vector.broadcast %205 : vector<1x512xf32> to vector<8x512xf32>
    %207 = arith.mulf %203, %206 : vector<8x512xf32>
    %c160 = arith.constant 160 : index
    %c0_143 = arith.constant 0 : index
    %208 = vector.load %arg14[%c160, %c0_143] : memref<200x512xf32, #tpu.memory_space<vmem>>, vector<8x512xf32>
    tpu.vector_store %arg14[%c160, %c0_143], %207 {strides = array<i32>} : memref<200x512xf32, #tpu.memory_space<vmem>>, vector<8x512xf32>,
    %c481_i32 = arith.constant 481 : i32
    %209 = tpu.dynamic_rotate %83 by %c481_i32 dim 1 : vector<8x512xf32>, i32 -> vector<8x512xf32>
    %c21 = arith.constant 21 : index
    %c0_144 = arith.constant 0 : index
    %c0_145 = arith.constant 0 : index
    %210 = vector.load %arg8[%c21, %c0_144, %c0_145] : memref<25x1x512xf32, #tpu.memory_space<vmem>>, vector<1x1x512xf32>
    %211 = vector.shape_cast %210 : vector<1x1x512xf32> to vector<1x512xf32>
    %212 = vector.broadcast %211 : vector<1x512xf32> to vector<8x512xf32>
    %213 = arith.mulf %209, %212 : vector<8x512xf32>
    %c168 = arith.constant 168 : index
    %c0_146 = arith.constant 0 : index
    %214 = vector.load %arg14[%c168, %c0_146] : memref<200x512xf32, #tpu.memory_space<vmem>>, vector<8x512xf32>
    tpu.vector_store %arg14[%c168, %c0_146], %213 {strides = array<i32>} : memref<200x512xf32, #tpu.memory_space<vmem>>, vector<8x512xf32>,
    %c480_i32 = arith.constant 480 : i32
    %215 = tpu.dynamic_rotate %83 by %c480_i32 dim 1 : vector<8x512xf32>, i32 -> vector<8x512xf32>
    %c22 = arith.constant 22 : index
    %c0_147 = arith.constant 0 : index
    %c0_148 = arith.constant 0 : index
    %216 = vector.load %arg8[%c22, %c0_147, %c0_148] : memref<25x1x512xf32, #tpu.memory_space<vmem>>, vector<1x1x512xf32>
    %217 = vector.shape_cast %216 : vector<1x1x512xf32> to vector<1x512xf32>
    %218 = vector.broadcast %217 : vector<1x512xf32> to vector<8x512xf32>
    %219 = arith.mulf %215, %218 : vector<8x512xf32>
    %c176 = arith.constant 176 : index
    %c0_149 = arith.constant 0 : index
    %220 = vector.load %arg14[%c176, %c0_149] : memref<200x512xf32, #tpu.memory_space<vmem>>, vector<8x512xf32>
    tpu.vector_store %arg14[%c176, %c0_149], %219 {strides = array<i32>} : memref<200x512xf32, #tpu.memory_space<vmem>>, vector<8x512xf32>,
    %c479_i32 = arith.constant 479 : i32
    %221 = tpu.dynamic_rotate %83 by %c479_i32 dim 1 : vector<8x512xf32>, i32 -> vector<8x512xf32>
    %c23 = arith.constant 23 : index
    %c0_150 = arith.constant 0 : index
    %c0_151 = arith.constant 0 : index
    %222 = vector.load %arg8[%c23, %c0_150, %c0_151] : memref<25x1x512xf32, #tpu.memory_space<vmem>>, vector<1x1x512xf32>
    %223 = vector.shape_cast %222 : vector<1x1x512xf32> to vector<1x512xf32>
    %224 = vector.broadcast %223 : vector<1x512xf32> to vector<8x512xf32>
    %225 = arith.mulf %221, %224 : vector<8x512xf32>
    %c184 = arith.constant 184 : index
    %c0_152 = arith.constant 0 : index
    %226 = vector.load %arg14[%c184, %c0_152] : memref<200x512xf32, #tpu.memory_space<vmem>>, vector<8x512xf32>
    tpu.vector_store %arg14[%c184, %c0_152], %225 {strides = array<i32>} : memref<200x512xf32, #tpu.memory_space<vmem>>, vector<8x512xf32>,
    %c478_i32 = arith.constant 478 : i32
    %227 = tpu.dynamic_rotate %83 by %c478_i32 dim 1 : vector<8x512xf32>, i32 -> vector<8x512xf32>
    %c24_153 = arith.constant 24 : index
    %c0_154 = arith.constant 0 : index
    %c0_155 = arith.constant 0 : index
    %228 = vector.load %arg8[%c24_153, %c0_154, %c0_155] : memref<25x1x512xf32, #tpu.memory_space<vmem>>, vector<1x1x512xf32>
    %229 = vector.shape_cast %228 : vector<1x1x512xf32> to vector<1x512xf32>
    %230 = vector.broadcast %229 : vector<1x512xf32> to vector<8x512xf32>
    %231 = arith.mulf %227, %230 : vector<8x512xf32>
    %c192 = arith.constant 192 : index
    %c0_156 = arith.constant 0 : index
    %232 = vector.load %arg14[%c192, %c0_156] : memref<200x512xf32, #tpu.memory_space<vmem>>, vector<8x512xf32>
    tpu.vector_store %arg14[%c192, %c0_156], %231 {strides = array<i32>} : memref<200x512xf32, #tpu.memory_space<vmem>>, vector<8x512xf32>,
    %c0_157 = arith.constant 0 : index
    %c0_158 = arith.constant 0 : index
    %233 = vector.load %arg9[%c0_157, %c0_158] : memref<8x200xf32, #tpu.memory_space<vmem>>, vector<8x200xf32>
    %c0_159 = arith.constant 0 : index
    %c0_160 = arith.constant 0 : index
    %234 = vector.load %arg14[%c0_159, %c0_160] : memref<200x512xf32, #tpu.memory_space<vmem>>, vector<200x512xf32>
    %cst_161 = arith.constant dense<0.000000e+00> : vector<8x512xf32>
    %235 = tpu.matmul %233, %234, %cst_161 {dimension_numbers = #tpu.dot_dimension_numbers<[1], [0], [0], [1], [0, 0, 1, 1], [], []>} : vector<8x200xf32>, vector<200x512xf32>, vector<8x512xf32> -> vector<8x512xf32>
    %c0_162 = arith.constant 0 : index
    %c0_163 = arith.constant 0 : index
    %236 = vector.load %arg10[%c0_162, %c0_163] : memref<8x1xf32, #tpu.memory_space<vmem>>, vector<8x1xf32>
    %237 = vector.broadcast %236 : vector<8x1xf32> to vector<8x512xf32>
    %238 = arith.addf %235, %237 : vector<8x512xf32>
    %c0_164 = arith.constant 0 : index
    %c0_165 = arith.constant 0 : index
    %239 = vector.load %arg11[%c0_164, %c0_165] : memref<8x1xf32, #tpu.memory_space<vmem>>, vector<8x1xf32>
    %cst_166 = arith.constant 0.000000e+00 : f32
    %240 = vector.broadcast %cst_166 : f32 to vector<8x512xf32>
    %241 = arith.cmpf ogt, %238, %240 : vector<8x512xf32>
    %242 = vector.broadcast %239 : vector<8x1xf32> to vector<8x512xf32>
    %243 = arith.mulf %242, %238 : vector<8x512xf32>
    %244 = arith.select %241, %238, %243 : vector<8x512xi1>, vector<8x512xf32>
    %c16_167 = arith.constant 16 : index
    %c0_168 = arith.constant 0 : index
    %245 = vector.load %arg12[%c16_167, %c0_168] : memref<32x512xf32, #tpu.memory_space<vmem>>, vector<8x512xf32>
    tpu.vector_store %arg12[%c16_167, %c0_168], %244 {strides = array<i32>} : memref<32x512xf32, #tpu.memory_space<vmem>>, vector<8x512xf32>,
    return
  }
  func.func @transform_0(%arg0: i32) -> (i32, i32) {
    %c0_i32 = arith.constant 0 : i32
    %c0_i32_0 = arith.constant 0 : i32
    return %c0_i32, %arg0 : i32, i32
  }
  func.func @transform_1(%arg0: i32) -> (i32, i32) {
    %c0_i32 = arith.constant 0 : i32
    %c0_i32_0 = arith.constant 0 : i32
    %c0_i32_1 = arith.constant 0 : i32
    return %c0_i32, %c0_i32_0 : i32, i32
  }
  func.func @transform_2(%arg0: i32) -> (i32, i32) {
    %c0_i32 = arith.constant 0 : i32
    %c0_i32_0 = arith.constant 0 : i32
    %c0_i32_1 = arith.constant 0 : i32
    return %c0_i32, %c0_i32_0 : i32, i32
  }
  func.func @transform_3(%arg0: i32) -> (i32, i32) {
    %c0_i32 = arith.constant 0 : i32
    %c0_i32_0 = arith.constant 0 : i32
    %c0_i32_1 = arith.constant 0 : i32
    return %c0_i32, %c0_i32_0 : i32, i32
  }
  func.func @transform_4(%arg0: i32) -> (i32, i32) {
    %c0_i32 = arith.constant 0 : i32
    %c0_i32_0 = arith.constant 0 : i32
    %c0_i32_1 = arith.constant 0 : i32
    return %c0_i32, %c0_i32_0 : i32, i32
  }
  func.func @transform_5(%arg0: i32) -> (i32, i32) {
    %c0_i32 = arith.constant 0 : i32
    %c0_i32_0 = arith.constant 0 : i32
    %c0_i32_1 = arith.constant 0 : i32
    return %c0_i32, %c0_i32_0 : i32, i32
  }
  func.func @transform_6(%arg0: i32) -> (i32, i32) {
    %c0_i32 = arith.constant 0 : i32
    %c0_i32_0 = arith.constant 0 : i32
    %c0_i32_1 = arith.constant 0 : i32
    return %c0_i32, %c0_i32_0 : i32, i32
  }
  func.func @transform_7(%arg0: i32) -> (i32, i32, i32) {
    %c0_i32 = arith.constant 0 : i32
    %c0_i32_0 = arith.constant 0 : i32
    %c0_i32_1 = arith.constant 0 : i32
    %c0_i32_2 = arith.constant 0 : i32
    return %c0_i32, %c0_i32_0, %c0_i32_1 : i32, i32, i32
  }
  func.func @transform_8(%arg0: i32) -> (i32, i32) {
    %c0_i32 = arith.constant 0 : i32
    %c0_i32_0 = arith.constant 0 : i32
    %c0_i32_1 = arith.constant 0 : i32
    return %c0_i32, %c0_i32_0 : i32, i32
  }
  func.func @transform_9(%arg0: i32) -> (i32, i32) {
    %c0_i32 = arith.constant 0 : i32
    %c0_i32_0 = arith.constant 0 : i32
    %c0_i32_1 = arith.constant 0 : i32
    return %c0_i32, %c0_i32_0 : i32, i32
  }
  func.func @transform_10(%arg0: i32) -> (i32, i32) {
    %c0_i32 = arith.constant 0 : i32
    %c0_i32_0 = arith.constant 0 : i32
    %c0_i32_1 = arith.constant 0 : i32
    return %c0_i32, %c0_i32_0 : i32, i32
  }
  func.func @transform_11(%arg0: i32) -> (i32, i32) {
    %c0_i32 = arith.constant 0 : i32
    %c0_i32_0 = arith.constant 0 : i32
    return %c0_i32, %arg0 : i32, i32
  }
}

</mosaic_0001>

<llo_original>
// kernel: tpu_custom_call.1
$region0: #{tpu_custom_call.1}
  #allocation0 [shape = 'u32[]', space=smem, size = 0x4, offset = 0x4, fixed_abs, tag = 'smem constant byte address 0x4 - core index']
  #allocation1 [shape = 'u32[144,128]{1,0:T(1,128)}', space=vmem, size = 0x12000, scoped, tag = 'internal scratch']
  #allocation2 [shape = 'f32[72,512]{1,0:T(8,128)}', space=vmem, size = 0x24000, scoped, tag = 'scratch operand']
  #allocation3 [shape = 'f32[200,512]{1,0:T(8,128)}', space=vmem, size = 0x64000, scoped, tag = 'scratch operand']
  %s0 = inlined_call_operand.vmem [shape: f32[4,512], index: 0, kind: input, shape index: {}]
  %s1 = inlined_call_operand.vmem [shape: f32[32,4], index: 1, kind: input, shape index: {}]
  %s2 = inlined_call_operand.vmem [shape: f32[32,1], index: 2, kind: input, shape index: {}]
  %s3 = inlined_call_operand.vmem [shape: f32[32,1], index: 3, kind: input, shape index: {}]
  %s4 = inlined_call_operand.vmem [shape: f32[8,72], index: 4, kind: input, shape index: {}]
  %s5 = inlined_call_operand.vmem [shape: f32[8,1], index: 5, kind: input, shape index: {}]
  %s6 = inlined_call_operand.vmem [shape: f32[8,1], index: 6, kind: input, shape index: {}]
  %s7 = inlined_call_operand.vmem [shape: f32[25,1,512], index: 7, kind: input, shape index: {}]
  %s8 = inlined_call_operand.vmem [shape: f32[8,200], index: 8, kind: input, shape index: {}]
  %s9 = inlined_call_operand.vmem [shape: f32[8,1], index: 9, kind: input, shape index: {}]
  %s10 = inlined_call_operand.vmem [shape: f32[8,1], index: 10, kind: input, shape index: {}]
  %s11 = inlined_call_operand.hbm [shape: f32[32,512], index: 11, kind: output, shape index: {}]
  %s12 = sld [smem:[#allocation0]]
  $region54: #{tpu_custom_call.1} parent=0
    _
  %s14 = ssub.s32 1, %s12
  %s15 = scalar_select 0, %s14, %s12
  $region1: #{tpu_custom_call.1} parent=0
    #allocation4 [shape = 'u8[65536]{0}', space=vmem, size = 0x10000, scoped, tag = 'output window, operand 0, single buffered']
    #allocation5 [shape = 's32[1]{0}', space=sflag, size = 0x4, scoped, tag = 'scoped memory for tpu_custom_call.1']
    %16 = vsyncpa [#allocation5], 0
    // Predicated region
    $region2: #{tpu_custom_call.1} parent=1 // pred_check
      _
    $region3: #{tpu_custom_call.1} parent=1 // pred_check_branch
      %18 = sbr.rel (0) target = $region5
    $region4: #{tpu_custom_call.1} parent=1 // pred_region
      _
    $region5: #{tpu_custom_call.1} parent=1 // pred_fallthru
      _
    // Predicated region
    $region6: #{tpu_custom_call.1} parent=1 // pred_check
      _
    $region7: #{tpu_custom_call.1} parent=1 // pred_check_branch
      %20 = sbr.rel (0) target = $region9
    $region8: #{tpu_custom_call.1} parent=1 // pred_region
      _
    $region9: #{tpu_custom_call.1} parent=1 // pred_fallthru
      _
    // Predicated region
    $region10: #{tpu_custom_call.1} parent=1 // pred_check
      _
    $region11: #{tpu_custom_call.1} parent=1 // pred_check_branch
      %22 = sbr.rel (0) target = $region13
    $region12: #{tpu_custom_call.1} parent=1 // pred_region
      _
    $region13: #{tpu_custom_call.1} parent=1 // pred_fallthru
      _
    // Predicated region
    $region14: #{tpu_custom_call.1} parent=1 // pred_check
      _
    $region15: #{tpu_custom_call.1} parent=1 // pred_check_branch
      %24 = sbr.rel (0) target = $region17
    $region16: #{tpu_custom_call.1} parent=1 // pred_region
      _
    $region17: #{tpu_custom_call.1} parent=1 // pred_fallthru
      _
    // Predicated region
    $region18: #{tpu_custom_call.1} parent=1 // pred_check
      _
    $region19: #{tpu_custom_call.1} parent=1 // pred_check_branch
      %26 = sbr.rel (0) target = $region21
    $region20: #{tpu_custom_call.1} parent=1 // pred_region
      _
    $region21: #{tpu_custom_call.1} parent=1 // pred_fallthru
      _
    // Predicated region
    $region22: #{tpu_custom_call.1} parent=1 // pred_check
      _
    $region23: #{tpu_custom_call.1} parent=1 // pred_check_branch
      %28 = sbr.rel (0) target = $region25
    $region24: #{tpu_custom_call.1} parent=1 // pred_region
      _
    $region25: #{tpu_custom_call.1} parent=1 // pred_fallthru
      _
    // Predicated region
    $region26: #{tpu_custom_call.1} parent=1 // pred_check
      _
    $region27: #{tpu_custom_call.1} parent=1 // pred_check_branch
      %30 = sbr.rel (0) target = $region29
    $region28: #{tpu_custom_call.1} parent=1 // pred_region
      _
    $region29: #{tpu_custom_call.1} parent=1 // pred_fallthru
      _
    // Predicated region
    $region30: #{tpu_custom_call.1} parent=1 // pred_check
      _
    $region31: #{tpu_custom_call.1} parent=1 // pred_check_branch
      %32 = sbr.rel (0) target = $region33
    $region32: #{tpu_custom_call.1} parent=1 // pred_region
      _
    $region33: #{tpu_custom_call.1} parent=1 // pred_fallthru
      _
    // Predicated region
    $region34: #{tpu_custom_call.1} parent=1 // pred_check
      _
    $region35: #{tpu_custom_call.1} parent=1 // pred_check_branch
      %34 = sbr.rel (0) target = $region37
    $region36: #{tpu_custom_call.1} parent=1 // pred_region
      _
    $region37: #{tpu_custom_call.1} parent=1 // pred_fallthru
      _
    // Predicated region
    $region38: #{tpu_custom_call.1} parent=1 // pred_check
      _
    $region39: #{tpu_custom_call.1} parent=1 // pred_check_branch
      %36 = sbr.rel (0) target = $region41
    $region40: #{tpu_custom_call.1} parent=1 // pred_region
      _
    $region41: #{tpu_custom_call.1} parent=1 // pred_fallthru
      _
    // Predicated region
    $region42: #{tpu_custom_call.1} parent=1 // pred_check
      _
    $region43: #{tpu_custom_call.1} parent=1 // pred_check_branch
      %38 = sbr.rel (0) target = $region45
    $region44: #{tpu_custom_call.1} parent=1 // pred_region
      _
    $region45: #{tpu_custom_call.1} parent=1 // pred_fallthru
      _
    %v39 = vld [vmem:[%s0] sm:$0xff]
    %v40 = vld [vmem:[%s0 + $0x8] sm:$0xff]
    %v41 = vld [vmem:[%s1] sm:$0xff]
    %v42 = vld [vmem:[%s1 + $0x8] sm:$0xff]
    %v43 = vld [vmem:[%s1 + $0x10] sm:$0xff]
    %v44 = vld [vmem:[%s1 + $0x18] sm:$0xff]
    %v45 = vld [vmem:[%s2] sm:$0xff]
    %v46 = vld [vmem:[%s2 + $0x8] sm:$0xff]
    %v47 = vld [vmem:[%s2 + $0x10] sm:$0xff]
    %v48 = vld [vmem:[%s2 + $0x18] sm:$0xff]
    %50 = vset.pattern.permute.xlu0 0
    %51 = vperm.xlu0 %50, %v45
    %v52 = vpop.permute.xlu0 %51
    %55 = vset.pattern.permute.xlu0 0
    %56 = vperm.xlu0 %55, %v46
    %v57 = vpop.permute.xlu0 %56
    %60 = vset.pattern.permute.xlu0 0
    %61 = vperm.xlu0 %60, %v47
    %v62 = vpop.permute.xlu0 %61
    %65 = vset.pattern.permute.xlu0 0
    %66 = vperm.xlu0 %65, %v48
    %v67 = vpop.permute.xlu0 %66
    %v71 = vcombine.high %v39, %v39
    %v72 = vcombine.high %v40, %v40
    %vm73 = vcmask 31744
    %v75 = vsel %vm73, %v41, 0
    %v78 = vsel %vm73, %v42, 0
    %v81 = vsel %vm73, %v43, 0
    %v84 = vsel %vm73, %v44, 0
    %vm86 = vcmask 1043456
    %v87 = vsel %vm86, %v39, 0
    %v89 = vsel %vm86, %v71, 0
    %v91 = vsel %vm86, %v40, 0
    %v93 = vsel %vm86, %v72, 0
    %95 = vmatprep.subr.mxu0 0.0
    %96 = vmatpush1.msra.mxu0 0.0
    %97 = vmatprep.subr.mxu0 0.0
    %98 = vmatpush1.msra.mxu0 0.0
    %99 = vmatprep.subr.mxu0 0.0
    %100 = vmatpush1.msra.mxu0 0.0
    %101 = vmatprep.subr.mxu0 0.0
    %102 = vmatpush1.msra.mxu0 0.0
    %103 = vmatprep.subr.mxu0 0.0
    %104 = vmatpush1.msra.mxu0 0.0
    %105 = vmatprep.subr.mxu0 0.0
    %106 = vmatpush1.msra.mxu0 0.0
    %107 = vmatprep.subr.mxu0 0.0
    %108 = vmatpush1.msra.mxu0 0.0
    %109 = vmatprep.subr.mxu0 0.0
    %110 = vmatpush1.msra.mxu0 0.0
    %111 = vmatprep.subr.mxu0 0.0
    %112 = vmatpush1.msra.mxu0 0.0
    %113 = vmatprep.subr.mxu0 0.0
    %114 = vmatpush1.msra.mxu0 0.0
    %115 = vmatprep.subr.mxu0 0.0
    %116 = vmatpush1.msra.mxu0 0.0
    %117 = vmatprep.subr.mxu0 0.0
    %118 = vmatpush1.msra.mxu0 0.0
    %119 = vmatprep.subr.mxu0 0.0
    %120 = vmatpush1.msra.mxu0 0.0
    %121 = vmatprep.subr.mxu0 0.0
    %122 = vmatpush1.msra.mxu0 0.0
    %123 = vmatprep.subr.mxu0 0.0
    %124 = vmatpush1.msra.mxu0 0.0
    %125 = vmatprep.subr.mxu0 %v89
    %126 = vmatpush1.msra.mxu0 %v87
    %127 = vmatprep.subr.mxu0 0.0
    %128 = vmatpush2.msra.mxu0 0.0
    %129 = vmatprep.subr.mxu0 0.0
    %130 = vmatpush2.msra.mxu0 0.0
    %131 = vmatprep.subr.mxu0 0.0
    %132 = vmatpush2.msra.mxu0 0.0
    %133 = vmatprep.subr.mxu0 0.0
    %134 = vmatpush2.msra.mxu0 0.0
    %135 = vmatprep.subr.mxu0 0.0
    %136 = vmatpush2.msra.mxu0 0.0
    %137 = vmatprep.subr.mxu0 0.0
    %138 = vmatpush2.msra.mxu0 0.0
    %139 = vmatprep.subr.mxu0 0.0
    %140 = vmatpush2.msra.mxu0 0.0
    %141 = vmatprep.subr.mxu0 0.0
    %142 = vmatpush2.msra.mxu0 0.0
    %143 = vmatprep.subr.mxu0 0.0
    %144 = vmatpush2.msra.mxu0 0.0
    %145 = vmatprep.subr.mxu0 0.0
    %146 = vmatpush2.msra.mxu0 0.0
    %147 = vmatprep.subr.mxu0 0.0
    %148 = vmatpush2.msra.mxu0 0.0
    %149 = vmatprep.subr.mxu0 0.0
    %150 = vmatpush2.msra.mxu0 0.0
    %151 = vmatprep.subr.mxu0 0.0
    %152 = vmatpush2.msra.mxu0 0.0
    %153 = vmatprep.subr.mxu0 0.0
    %154 = vmatpush2.msra.mxu0 0.0
    %155 = vmatprep.subr.mxu0 0.0
    %156 = vmatpush2.msra.mxu0 0.0
    %157 = vmatprep.subr.mxu0 0.0
    %158 = vmatpush2.msra.mxu0 0.0
    %159 = vmatprep.mubr.f32.mxu0 0.0
    %160 = vmatmul.mubr.f32.gmra.mxu0 %v75
    %v161 = vpop.f32.mrf.mxu0
    %v162 = vadd.f32 %v52, %v161
    %v163 = vpop.f32.mrf.mxu0
    %v164 = vadd.f32 %v52, %v163
    %165 = vmatprep.mubr.f32.mxu0 0.0
    %166 = vmatmul.mubr.f32.gmra.mxu0 %v78
    %v167 = vpop.f32.mrf.mxu0
    %v168 = vadd.f32 %v57, %v167
    %v169 = vpop.f32.mrf.mxu0
    %v170 = vadd.f32 %v57, %v169
    %171 = vmatprep.mubr.f32.mxu0 0.0
    %172 = vmatmul.mubr.f32.gmra.mxu0 %v81
    %v173 = vpop.f32.mrf.mxu0
    %v174 = vadd.f32 %v62, %v173
    %v175 = vpop.f32.mrf.mxu0
    %v176 = vadd.f32 %v62, %v175
    %177 = vmatprep.mubr.f32.mxu0 0.0
    %178 = vmatmul.mubr.f32.gmra.mxu0 %v84
    %v179 = vpop.f32.mrf.mxu0
    %v180 = vadd.f32 %v67, %v179
    %v181 = vpop.f32.mrf.mxu0
    %v182 = vadd.f32 %v67, %v181
    %183 = vdwg.mxu0
    %184 = vmatprep.subr.mxu0 0.0
    %185 = vmatpush1.msra.mxu0 0.0
    %186 = vmatprep.subr.mxu0 0.0
    %187 = vmatpush1.msra.mxu0 0.0
    %188 = vmatprep.subr.mxu0 0.0
    %189 = vmatpush1.msra.mxu0 0.0
    %190 = vmatprep.subr.mxu0 0.0
    %191 = vmatpush1.msra.mxu0 0.0
    %192 = vmatprep.subr.mxu0 0.0
    %193 = vmatpush1.msra.mxu0 0.0
    %194 = vmatprep.subr.mxu0 0.0
    %195 = vmatpush1.msra.mxu0 0.0
    %196 = vmatprep.subr.mxu0 0.0
    %197 = vmatpush1.msra.mxu0 0.0
    %198 = vmatprep.subr.mxu0 0.0
    %199 = vmatpush1.msra.mxu0 0.0
    %200 = vmatprep.subr.mxu0 0.0
    %201 = vmatpush1.msra.mxu0 0.0
    %202 = vmatprep.subr.mxu0 0.0
    %203 = vmatpush1.msra.mxu0 0.0
    %204 = vmatprep.subr.mxu0 0.0
    %205 = vmatpush1.msra.mxu0 0.0
    %206 = vmatprep.subr.mxu0 0.0
    %207 = vmatpush1.msra.mxu0 0.0
    %208 = vmatprep.subr.mxu0 0.0
    %209 = vmatpush1.msra.mxu0 0.0
    %210 = vmatprep.subr.mxu0 0.0
    %211 = vmatpush1.msra.mxu0 0.0
    %212 = vmatprep.subr.mxu0 0.0
    %213 = vmatpush1.msra.mxu0 0.0
    %214 = vmatprep.subr.mxu0 %v93
    %215 = vmatpush1.msra.mxu0 %v91
    %216 = vmatprep.subr.mxu0 0.0
    %217 = vmatpush2.msra.mxu0 0.0
    %218 = vmatprep.subr.mxu0 0.0
    %219 = vmatpush2.msra.mxu0 0.0
    %220 = vmatprep.subr.mxu0 0.0
    %221 = vmatpush2.msra.mxu0 0.0
    %222 = vmatprep.subr.mxu0 0.0
    %223 = vmatpush2.msra.mxu0 0.0
    %224 = vmatprep.subr.mxu0 0.0
    %225 = vmatpush2.msra.mxu0 0.0
    %226 = vmatprep.subr.mxu0 0.0
    %227 = vmatpush2.msra.mxu0 0.0
    %228 = vmatprep.subr.mxu0 0.0
    %229 = vmatpush2.msra.mxu0 0.0
    %230 = vmatprep.subr.mxu0 0.0
    %231 = vmatpush2.msra.mxu0 0.0
    %232 = vmatprep.subr.mxu0 0.0
    %233 = vmatpush2.msra.mxu0 0.0
    %234 = vmatprep.subr.mxu0 0.0
    %235 = vmatpush2.msra.mxu0 0.0
    %236 = vmatprep.subr.mxu0 0.0
    %237 = vmatpush2.msra.mxu0 0.0
    %238 = vmatprep.subr.mxu0 0.0
    %239 = vmatpush2.msra.mxu0 0.0
    %240 = vmatprep.subr.mxu0 0.0
    %241 = vmatpush2.msra.mxu0 0.0
    %242 = vmatprep.subr.mxu0 0.0
    %243 = vmatpush2.msra.mxu0 0.0
    %244 = vmatprep.subr.mxu0 0.0
    %245 = vmatpush2.msra.mxu0 0.0
    %246 = vmatprep.subr.mxu0 0.0
    %247 = vmatpush2.msra.mxu0 0.0
    %248 = vmatprep.mubr.f32.mxu0 0.0
    %249 = vmatmul.mubr.f32.gmra.mxu0 %v75
    %v250 = vpop.f32.mrf.mxu0
    %v251 = vadd.f32 %v52, %v250
    %v252 = vpop.f32.mrf.mxu0
    %v253 = vadd.f32 %v52, %v252
    %254 = vmatprep.mubr.f32.mxu0 0.0
    %255 = vmatmul.mubr.f32.gmra.mxu0 %v78
    %v256 = vpop.f32.mrf.mxu0
    %v257 = vadd.f32 %v57, %v256
    %v258 = vpop.f32.mrf.mxu0
    %v259 = vadd.f32 %v57, %v258
    %260 = vmatprep.mubr.f32.mxu0 0.0
    %261 = vmatmul.mubr.f32.gmra.mxu0 %v81
    %v262 = vpop.f32.mrf.mxu0
    %v263 = vadd.f32 %v62, %v262
    %v264 = vpop.f32.mrf.mxu0
    %v265 = vadd.f32 %v62, %v264
    %266 = vmatprep.mubr.f32.mxu0 0.0
    %267 = vmatmul.mubr.f32.gmra.mxu0 %v84
    %v268 = vpop.f32.mrf.mxu0
    %v269 = vadd.f32 %v67, %v268
    %v270 = vpop.f32.mrf.mxu0
    %v271 = vadd.f32 %v67, %v270
    %272 = vdwg.mxu0
    %vm273 = vcmp.gt.f32.partialorder %v162, 0.0
    %vm274 = vcmp.gt.f32.partialorder %v164, 0.0
    %vm275 = vcmp.gt.f32.partialorder %v251, 0.0
    %vm276 = vcmp.gt.f32.partialorder %v253, 0.0
    %vm277 = vcmp.gt.f32.partialorder %v168, 0.0
    %vm278 = vcmp.gt.f32.partialorder %v170, 0.0
    %vm279 = vcmp.gt.f32.partialorder %v257, 0.0
    %vm280 = vcmp.gt.f32.partialorder %v259, 0.0
    %vm281 = vcmp.gt.f32.partialorder %v174, 0.0
    %vm282 = vcmp.gt.f32.partialorder %v176, 0.0
    %vm283 = vcmp.gt.f32.partialorder %v263, 0.0
    %vm284 = vcmp.gt.f32.partialorder %v265, 0.0
    %vm285 = vcmp.gt.f32.partialorder %v180, 0.0
    %vm286 = vcmp.gt.f32.partialorder %v182, 0.0
    %vm287 = vcmp.gt.f32.partialorder %v269, 0.0
    %vm288 = vcmp.gt.f32.partialorder %v271, 0.0
    %v289 = vld [vmem:[%s3] sm:$0xff]
    %v290 = vld [vmem:[%s3 + $0x8] sm:$0xff]
    %v291 = vld [vmem:[%s3 + $0x10] sm:$0xff]
    %v292 = vld [vmem:[%s3 + $0x18] sm:$0xff]
    %294 = vset.pattern.permute.xlu0 0
    %295 = vperm.xlu0 %294, %v289
    %v296 = vpop.permute.xlu0 %295
    %299 = vset.pattern.permute.xlu0 0
    %300 = vperm.xlu0 %299, %v290
    %v301 = vpop.permute.xlu0 %300
    %304 = vset.pattern.permute.xlu0 0
    %305 = vperm.xlu0 %304, %v291
    %v306 = vpop.permute.xlu0 %305
    %309 = vset.pattern.permute.xlu0 0
    %310 = vperm.xlu0 %309, %v292
    %v311 = vpop.permute.xlu0 %310
    %v313 = vmul.f32 %v296, %v162
    %v314 = vmul.f32 %v296, %v164
    %v315 = vmul.f32 %v296, %v251
    %v316 = vmul.f32 %v296, %v253
    %v317 = vmul.f32 %v301, %v168
    %v318 = vmul.f32 %v301, %v170
    %v319 = vmul.f32 %v301, %v257
    %v320 = vmul.f32 %v301, %v259
    %v321 = vmul.f32 %v306, %v174
    %v322 = vmul.f32 %v306, %v176
    %v323 = vmul.f32 %v306, %v263
    %v324 = vmul.f32 %v306, %v265
    %v325 = vmul.f32 %v311, %v180
    %v326 = vmul.f32 %v311, %v182
    %v327 = vmul.f32 %v311, %v269
    %v328 = vmul.f32 %v311, %v271
    %v329 = vsel %vm273, %v162, %v313
    %v330 = vsel %vm274, %v164, %v314
    %v331 = vsel %vm275, %v251, %v315
    %v332 = vsel %vm276, %v253, %v316
    %v333 = vsel %vm277, %v168, %v317
    %v334 = vsel %vm278, %v170, %v318
    %v335 = vsel %vm279, %v257, %v319
    %v336 = vsel %vm280, %v259, %v320
    %v337 = vsel %vm281, %v174, %v321
    %v338 = vsel %vm282, %v176, %v322
    %v339 = vsel %vm283, %v263, %v323
    %v340 = vsel %vm284, %v265, %v324
    %v341 = vsel %vm285, %v180, %v325
    %v342 = vsel %vm286, %v182, %v326
    %v343 = vsel %vm287, %v269, %v327
    %v344 = vsel %vm288, %v271, %v328
    %345 = vst [vmem:[#allocation4] sm:$0xff] %v329
    %346 = vst [vmem:[#allocation4 + $0x8] sm:$0xff] %v330
    %347 = vst [vmem:[#allocation4 + $0x10] sm:$0xff] %v331
    %348 = vst [vmem:[#allocation4 + $0x18] sm:$0xff] %v332
    %349 = vst [vmem:[#allocation4 + $0x60] sm:$0xff] %v341
    %350 = vst [vmem:[#allocation4 + $0x68] sm:$0xff] %v342
    %351 = vst [vmem:[#allocation4 + $0x70] sm:$0xff] %v343
    %352 = vst [vmem:[#allocation4 + $0x78] sm:$0xff] %v344
    %353 = vrot.lane.b32.xlu0 %v333, 17
    %v354 = vpop.permute.xlu0 %353
    %355 = vrot.lane.b32.xlu0 %v334, 17
    %v356 = vpop.permute.xlu0 %355
    %357 = vrot.lane.b32.xlu0 %v335, 17
    %v358 = vpop.permute.xlu0 %357
    %359 = vrot.lane.b32.xlu0 %v336, 17
    %v360 = vpop.permute.xlu0 %359
    %v361 = vlaneseq
    %v362 = vand.u32 %v361, 127
    %vm363 = vcmp.lt.s32.totalorder %v362, 17
    %v364 = vsel %vm363, %v358, %v360
    %v365 = vsel %vm363, %v356, %v358
    %v366 = vsel %vm363, %v354, %v356
    %v367 = vsel %vm363, %v360, %v354
    %s368 = scalar_lea.vmem %s7, 24
    %v369 = vld [vmem:[%s368] sm:$0xf]
    %v371 = vlaneseq
    %v372 = vshrl.u32 %v371, 7
    %v373 = vsub.s32 0, %v372
    %v374 = vrot.slane %v369, %v373
    %v375 = vlaneseq
    %v376 = vshrl.u32 %v375, 7
    %v377 = vsub.s32 1, %v376
    %v378 = vrot.slane %v369, %v377
    %v379 = vlaneseq
    %v380 = vshrl.u32 %v379, 7
    %v381 = vsub.s32 2, %v380
    %v382 = vrot.slane %v369, %v381
    %v383 = vlaneseq
    %v384 = vshrl.u32 %v383, 7
    %v385 = vsub.s32 3, %v384
    %v386 = vrot.slane %v369, %v385
    %v391 = vmul.f32 %v367, %v374
    %v392 = vmul.f32 %v366, %v378
    %v393 = vmul.f32 %v365, %v382
    %v394 = vmul.f32 %v364, %v386
    %395 = vst [vmem:[#allocation2] sm:$0xff] %v391
    %396 = vst [vmem:[#allocation2 + $0x8] sm:$0xff] %v392
    %397 = vst [vmem:[#allocation2 + $0x10] sm:$0xff] %v393
    %398 = vst [vmem:[#allocation2 + $0x18] sm:$0xff] %v394
    %399 = vrot.lane.b32.xlu0 %v333, 16
    %v400 = vpop.permute.xlu0 %399
    %401 = vrot.lane.b32.xlu0 %v334, 16
    %v402 = vpop.permute.xlu0 %401
    %403 = vrot.lane.b32.xlu0 %v335, 16
    %v404 = vpop.permute.xlu0 %403
    %405 = vrot.lane.b32.xlu0 %v336, 16
    %v406 = vpop.permute.xlu0 %405
    %vm407 = vcmp.lt.s32.totalorder %v362, 16
    %v408 = vsel %vm407, %v404, %v406
    %v409 = vsel %vm407, %v402, %v404
    %v410 = vsel %vm407, %v400, %v402
    %v411 = vsel %vm407, %v406, %v400
    %s412 = scalar_lea.vmem %s7, 28
    %v413 = vld [vmem:[%s412] sm:$0xf]
    %v415 = vlaneseq
    %v416 = vshrl.u32 %v415, 7
    %v417 = vsub.s32 0, %v416
    %v418 = vrot.slane %v413, %v417
    %v419 = vlaneseq
    %v420 = vshrl.u32 %v419, 7
    %v421 = vsub.s32 1, %v420
    %v422 = vrot.slane %v413, %v421
    %v423 = vlaneseq
    %v424 = vshrl.u32 %v423, 7
    %v425 = vsub.s32 2, %v424
    %v426 = vrot.slane %v413, %v425
    %v427 = vlaneseq
    %v428 = vshrl.u32 %v427, 7
    %v429 = vsub.s32 3, %v428
    %v430 = vrot.slane %v413, %v429
    %v435 = vmul.f32 %v411, %v418
    %v436 = vmul.f32 %v410, %v422
    %v437 = vmul.f32 %v409, %v426
    %v438 = vmul.f32 %v408, %v430
    %439 = vst [vmem:[#allocation2 + $0x20] sm:$0xff] %v435
    %440 = vst [vmem:[#allocation2 + $0x28] sm:$0xff] %v436
    %441 = vst [vmem:[#allocation2 + $0x30] sm:$0xff] %v437
    %442 = vst [vmem:[#allocation2 + $0x38] sm:$0xff] %v438
    %443 = vrot.lane.b32.xlu0 %v333, 15
    %v444 = vpop.permute.xlu0 %443
    %445 = vrot.lane.b32.xlu0 %v334, 15
    %v446 = vpop.permute.xlu0 %445
    %447 = vrot.lane.b32.xlu0 %v335, 15
    %v448 = vpop.permute.xlu0 %447
    %449 = vrot.lane.b32.xlu0 %v336, 15
    %v450 = vpop.permute.xlu0 %449
    %vm451 = vcmp.lt.s32.totalorder %v362, 15
    %v452 = vsel %vm451, %v448, %v450
    %v453 = vsel %vm451, %v446, %v448
    %v454 = vsel %vm451, %v444, %v446
    %v455 = vsel %vm451, %v450, %v444
    %s456 = scalar_lea.vmem %s7, 32
    %v457 = vld [vmem:[%s456] sm:$0xf]
    %v459 = vlaneseq
    %v460 = vshrl.u32 %v459, 7
    %v461 = vsub.s32 0, %v460
    %v462 = vrot.slane %v457, %v461
    %v463 = vlaneseq
    %v464 = vshrl.u32 %v463, 7
    %v465 = vsub.s32 1, %v464
    %v466 = vrot.slane %v457, %v465
    %v467 = vlaneseq
    %v468 = vshrl.u32 %v467, 7
    %v469 = vsub.s32 2, %v468
    %v470 = vrot.slane %v457, %v469
    %v471 = vlaneseq
    %v472 = vshrl.u32 %v471, 7
    %v473 = vsub.s32 3, %v472
    %v474 = vrot.slane %v457, %v473
    %v479 = vmul.f32 %v455, %v462
    %v480 = vmul.f32 %v454, %v466
    %v481 = vmul.f32 %v453, %v470
    %v482 = vmul.f32 %v452, %v474
    %483 = vst [vmem:[#allocation2 + $0x40] sm:$0xff] %v479
    %484 = vst [vmem:[#allocation2 + $0x48] sm:$0xff] %v480
    %485 = vst [vmem:[#allocation2 + $0x50] sm:$0xff] %v481
    %486 = vst [vmem:[#allocation2 + $0x58] sm:$0xff] %v482
    %487 = vrot.lane.b32.xlu0 %v333, 1
    %v488 = vpop.permute.xlu0 %487
    %489 = vrot.lane.b32.xlu0 %v334, 1
    %v490 = vpop.permute.xlu0 %489
    %491 = vrot.lane.b32.xlu0 %v335, 1
    %v492 = vpop.permute.xlu0 %491
    %493 = vrot.lane.b32.xlu0 %v336, 1
    %v494 = vpop.permute.xlu0 %493
    %vm495 = vcmp.lt.s32.totalorder %v362, 1
    %v496 = vsel %vm495, %v492, %v494
    %v497 = vsel %vm495, %v490, %v492
    %v498 = vsel %vm495, %v488, %v490
    %v499 = vsel %vm495, %v494, %v488
    %s500 = scalar_lea.vmem %s7, 44
    %v501 = vld [vmem:[%s500] sm:$0xf]
    %v503 = vlaneseq
    %v504 = vshrl.u32 %v503, 7
    %v505 = vsub.s32 0, %v504
    %v506 = vrot.slane %v501, %v505
    %v507 = vlaneseq
    %v508 = vshrl.u32 %v507, 7
    %v509 = vsub.s32 1, %v508
    %v510 = vrot.slane %v501, %v509
    %v511 = vlaneseq
    %v512 = vshrl.u32 %v511, 7
    %v513 = vsub.s32 2, %v512
    %v514 = vrot.slane %v501, %v513
    %v515 = vlaneseq
    %v516 = vshrl.u32 %v515, 7
    %v517 = vsub.s32 3, %v516
    %v518 = vrot.slane %v501, %v517
    %v523 = vmul.f32 %v499, %v506
    %v524 = vmul.f32 %v498, %v510
    %v525 = vmul.f32 %v497, %v514
    %v526 = vmul.f32 %v496, %v518
    %527 = vst [vmem:[#allocation2 + $0x60] sm:$0xff] %v523
    %528 = vst [vmem:[#allocation2 + $0x68] sm:$0xff] %v524
    %529 = vst [vmem:[#allocation2 + $0x70] sm:$0xff] %v525
    %530 = vst [vmem:[#allocation2 + $0x78] sm:$0xff] %v526
    %s531 = scalar_lea.vmem %s7, 48
    %v532 = vld [vmem:[%s531] sm:$0xf]
    %v534 = vlaneseq
    %v535 = vshrl.u32 %v534, 7
    %v536 = vsub.s32 0, %v535
    %v537 = vrot.slane %v532, %v536
    %v538 = vlaneseq
    %v539 = vshrl.u32 %v538, 7
    %v540 = vsub.s32 1, %v539
    %v541 = vrot.slane %v532, %v540
    %v542 = vlaneseq
    %v543 = vshrl.u32 %v542, 7
    %v544 = vsub.s32 2, %v543
    %v545 = vrot.slane %v532, %v544
    %v546 = vlaneseq
    %v547 = vshrl.u32 %v546, 7
    %v548 = vsub.s32 3, %v547
    %v549 = vrot.slane %v532, %v548
    %v554 = vmul.f32 %v333, %v537
    %v555 = vmul.f32 %v334, %v541
    %v556 = vmul.f32 %v335, %v545
    %v557 = vmul.f32 %v336, %v549
    %558 = vst [vmem:[#allocation2 + $0x80] sm:$0xff] %v554
    %559 = vst [vmem:[#allocation2 + $0x88] sm:$0xff] %v555
    %560 = vst [vmem:[#allocation2 + $0x90] sm:$0xff] %v556
    %561 = vst [vmem:[#allocation2 + $0x98] sm:$0xff] %v557
    %562 = vrot.lane.b32.xlu0 %v333, 127
    %v563 = vpop.permute.xlu0 %562
    %564 = vrot.lane.b32.xlu0 %v334, 127
    %v565 = vpop.permute.xlu0 %564
    %566 = vrot.lane.b32.xlu0 %v335, 127
    %v567 = vpop.permute.xlu0 %566
    %568 = vrot.lane.b32.xlu0 %v336, 127
    %v569 = vpop.permute.xlu0 %568
    %vm570 = vcmp.lt.s32.totalorder %v362, 127
    %v571 = vsel %vm570, %v567, %v569
    %v572 = vsel %vm570, %v565, %v567
    %v573 = vsel %vm570, %v563, %v565
    %v574 = vsel %vm570, %v569, %v563
    %s575 = scalar_lea.vmem %s7, 52
    %v576 = vld [vmem:[%s575] sm:$0xf]
    %v578 = vlaneseq
    %v579 = vshrl.u32 %v578, 7
    %v580 = vsub.s32 0, %v579
    %v581 = vrot.slane %v576, %v580
    %v582 = vlaneseq
    %v583 = vshrl.u32 %v582, 7
    %v584 = vsub.s32 1, %v583
    %v585 = vrot.slane %v576, %v584
    %v586 = vlaneseq
    %v587 = vshrl.u32 %v586, 7
    %v588 = vsub.s32 2, %v587
    %v589 = vrot.slane %v576, %v588
    %v590 = vlaneseq
    %v591 = vshrl.u32 %v590, 7
    %v592 = vsub.s32 3, %v591
    %v593 = vrot.slane %v576, %v592
    %v598 = vmul.f32 %v573, %v581
    %v599 = vmul.f32 %v572, %v585
    %v600 = vmul.f32 %v571, %v589
    %v601 = vmul.f32 %v574, %v593
    %602 = vst [vmem:[#allocation2 + $0xa0] sm:$0xff] %v598
    %603 = vst [vmem:[#allocation2 + $0xa8] sm:$0xff] %v599
    %604 = vst [vmem:[#allocation2 + $0xb0] sm:$0xff] %v600
    %605 = vst [vmem:[#allocation2 + $0xb8] sm:$0xff] %v601
    %606 = vrot.lane.b32.xlu0 %v333, 113
    %v607 = vpop.permute.xlu0 %606
    %608 = vrot.lane.b32.xlu0 %v334, 113
    %v609 = vpop.permute.xlu0 %608
    %610 = vrot.lane.b32.xlu0 %v335, 113
    %v611 = vpop.permute.xlu0 %610
    %612 = vrot.lane.b32.xlu0 %v336, 113
    %v613 = vpop.permute.xlu0 %612
    %vm614 = vcmp.lt.s32.totalorder %v362, 113
    %v615 = vsel %vm614, %v611, %v613
    %v616 = vsel %vm614, %v609, %v611
    %v617 = vsel %vm614, %v607, %v609
    %v618 = vsel %vm614, %v613, %v607
    %s619 = scalar_lea.vmem %s7, 64
    %v620 = vld [vmem:[%s619] sm:$0xf]
    %v622 = vlaneseq
    %v623 = vshrl.u32 %v622, 7
    %v624 = vsub.s32 0, %v623
    %v625 = vrot.slane %v620, %v624
    %v626 = vlaneseq
    %v627 = vshrl.u32 %v626, 7
    %v628 = vsub.s32 1, %v627
    %v629 = vrot.slane %v620, %v628
    %v630 = vlaneseq
    %v631 = vshrl.u32 %v630, 7
    %v632 = vsub.s32 2, %v631
    %v633 = vrot.slane %v620, %v632
    %v634 = vlaneseq
    %v635 = vshrl.u32 %v634, 7
    %v636 = vsub.s32 3, %v635
    %v637 = vrot.slane %v620, %v636
    %v642 = vmul.f32 %v617, %v625
    %v643 = vmul.f32 %v616, %v629
    %v644 = vmul.f32 %v615, %v633
    %v645 = vmul.f32 %v618, %v637
    %646 = vst [vmem:[#allocation2 + $0xc0] sm:$0xff] %v642
    %647 = vst [vmem:[#allocation2 + $0xc8] sm:$0xff] %v643
    %648 = vst [vmem:[#allocation2 + $0xd0] sm:$0xff] %v644
    %649 = vst [vmem:[#allocation2 + $0xd8] sm:$0xff] %v645
    %650 = vrot.lane.b32.xlu0 %v333, 112
    %v651 = vpop.permute.xlu0 %650
    %652 = vrot.lane.b32.xlu0 %v334, 112
    %v653 = vpop.permute.xlu0 %652
    %654 = vrot.lane.b32.xlu0 %v335, 112
    %v655 = vpop.permute.xlu0 %654
    %656 = vrot.lane.b32.xlu0 %v336, 112
    %v657 = vpop.permute.xlu0 %656
    %vm658 = vcmp.lt.s32.totalorder %v362, 112
    %v659 = vsel %vm658, %v655, %v657
    %v660 = vsel %vm658, %v653, %v655
    %v661 = vsel %vm658, %v651, %v653
    %v662 = vsel %vm658, %v657, %v651
    %s663 = scalar_lea.vmem %s7, 68
    %v664 = vld [vmem:[%s663] sm:$0xf]
    %v666 = vlaneseq
    %v667 = vshrl.u32 %v666, 7
    %v668 = vsub.s32 0, %v667
    %v669 = vrot.slane %v664, %v668
    %v670 = vlaneseq
    %v671 = vshrl.u32 %v670, 7
    %v672 = vsub.s32 1, %v671
    %v673 = vrot.slane %v664, %v672
    %v674 = vlaneseq
    %v675 = vshrl.u32 %v674, 7
    %v676 = vsub.s32 2, %v675
    %v677 = vrot.slane %v664, %v676
    %v678 = vlaneseq
    %v679 = vshrl.u32 %v678, 7
    %v680 = vsub.s32 3, %v679
    %v681 = vrot.slane %v664, %v680
    %v686 = vmul.f32 %v661, %v669
    %v687 = vmul.f32 %v660, %v673
    %v688 = vmul.f32 %v659, %v677
    %v689 = vmul.f32 %v662, %v681
    %690 = vst [vmem:[#allocation2 + $0xe0] sm:$0xff] %v686
    %691 = vst [vmem:[#allocation2 + $0xe8] sm:$0xff] %v687
    %692 = vst [vmem:[#allocation2 + $0xf0] sm:$0xff] %v688
    %693 = vst [vmem:[#allocation2 + $0xf8] sm:$0xff] %v689
    %694 = vrot.lane.b32.xlu0 %v333, 111
    %v695 = vpop.permute.xlu0 %694
    %696 = vrot.lane.b32.xlu0 %v334, 111
    %v697 = vpop.permute.xlu0 %696
    %698 = vrot.lane.b32.xlu0 %v335, 111
    %v699 = vpop.permute.xlu0 %698
    %700 = vrot.lane.b32.xlu0 %v336, 111
    %v701 = vpop.permute.xlu0 %700
    %vm702 = vcmp.lt.s32.totalorder %v362, 111
    %v703 = vsel %vm702, %v699, %v701
    %v704 = vsel %vm702, %v697, %v699
    %v705 = vsel %vm702, %v695, %v697
    %v706 = vsel %vm702, %v701, %v695
    %s707 = scalar_lea.vmem %s7, 72
    %v708 = vld [vmem:[%s707] sm:$0xf]
    %v710 = vlaneseq
    %v711 = vshrl.u32 %v710, 7
    %v712 = vsub.s32 0, %v711
    %v713 = vrot.slane %v708, %v712
    %v714 = vlaneseq
    %v715 = vshrl.u32 %v714, 7
    %v716 = vsub.s32 1, %v715
    %v717 = vrot.slane %v708, %v716
    %v718 = vlaneseq
    %v719 = vshrl.u32 %v718, 7
    %v720 = vsub.s32 2, %v719
    %v721 = vrot.slane %v708, %v720
    %v722 = vlaneseq
    %v723 = vshrl.u32 %v722, 7
    %v724 = vsub.s32 3, %v723
    %v725 = vrot.slane %v708, %v724
    %v730 = vmul.f32 %v705, %v713
    %v731 = vmul.f32 %v704, %v717
    %v732 = vmul.f32 %v703, %v721
    %v733 = vmul.f32 %v706, %v725
    %734 = vst [vmem:[#allocation2 + $0x100] sm:$0xff] %v730
    %735 = vst [vmem:[#allocation2 + $0x108] sm:$0xff] %v731
    %736 = vst [vmem:[#allocation2 + $0x110] sm:$0xff] %v732
    %737 = vst [vmem:[#allocation2 + $0x118] sm:$0xff] %v733
    %v738 = vld [vmem:[%s4] sm:$0xff]
    %v739 = vld [vmem:[#allocation2] sm:$0xff]
    %v740 = vld [vmem:[#allocation2 + $0x8] sm:$0xff]
    %v741 = vld [vmem:[#allocation2 + $0x10] sm:$0xff]
    %v742 = vld [vmem:[#allocation2 + $0x18] sm:$0xff]
    %v743 = vld [vmem:[#allocation2 + $0x20] sm:$0xff]
    %v744 = vld [vmem:[#allocation2 + $0x28] sm:$0xff]
    %v745 = vld [vmem:[#allocation2 + $0x30] sm:$0xff]
    %v746 = vld [vmem:[#allocation2 + $0x38] sm:$0xff]
    %v747 = vld [vmem:[#allocation2 + $0x40] sm:$0xff]
    %v748 = vld [vmem:[#allocation2 + $0x48] sm:$0xff]
    %v749 = vld [vmem:[#allocation2 + $0x50] sm:$0xff]
    %v750 = vld [vmem:[#allocation2 + $0x58] sm:$0xff]
    %v751 = vld [vmem:[#allocation2 + $0x60] sm:$0xff]
    %v752 = vld [vmem:[#allocation2 + $0x68] sm:$0xff]
    %v753 = vld [vmem:[#allocation2 + $0x70] sm:$0xff]
    %v754 = vld [vmem:[#allocation2 + $0x78] sm:$0xff]
    %v755 = vld [vmem:[#allocation2 + $0x80] sm:$0xff]
    %v756 = vld [vmem:[#allocation2 + $0x88] sm:$0xff]
    %v757 = vld [vmem:[#allocation2 + $0x90] sm:$0xff]
    %v758 = vld [vmem:[#allocation2 + $0x98] sm:$0xff]
    %v759 = vld [vmem:[#allocation2 + $0xa0] sm:$0xff]
    %v760 = vld [vmem:[#allocation2 + $0xa8] sm:$0xff]
    %v761 = vld [vmem:[#allocation2 + $0xb0] sm:$0xff]
    %v762 = vld [vmem:[#allocation2 + $0xb8] sm:$0xff]
    %v763 = vld [vmem:[#allocation2 + $0xc0] sm:$0xff]
    %v764 = vld [vmem:[#allocation2 + $0xc8] sm:$0xff]
    %v765 = vld [vmem:[#allocation2 + $0xd0] sm:$0xff]
    %v766 = vld [vmem:[#allocation2 + $0xd8] sm:$0xff]
    %v767 = vld [vmem:[#allocation2 + $0xe0] sm:$0xff]
    %v768 = vld [vmem:[#allocation2 + $0xe8] sm:$0xff]
    %v769 = vld [vmem:[#allocation2 + $0xf0] sm:$0xff]
    %v770 = vld [vmem:[#allocation2 + $0xf8] sm:$0xff]
    %v771 = vld [vmem:[#allocation2 + $0x100] sm:$0xff]
    %v772 = vld [vmem:[#allocation2 + $0x108] sm:$0xff]
    %v773 = vld [vmem:[#allocation2 + $0x110] sm:$0xff]
    %v774 = vld [vmem:[#allocation2 + $0x118] sm:$0xff]
    %v775 = vld [vmem:[%s5] sm:$0xff]
    %777 = vset.pattern.permute.xlu0 0
    %778 = vperm.xlu0 %777, %v775
    %v779 = vpop.permute.xlu0 %778
    %vm781 = vcmask 588800
    %v783 = vsel %vm781, %v738, 0
    %785 = vmatprep.subr.mxu0 0.0
    %786 = vmatpush1.msra.mxu0 0.0
    %787 = vmatprep.subr.mxu0 0.0
    %788 = vmatpush1.msra.mxu0 0.0
    %789 = vmatprep.subr.mxu0 0.0
    %790 = vmatpush1.msra.mxu0 0.0
    %791 = vmatprep.subr.mxu0 0.0
    %792 = vmatpush1.msra.mxu0 0.0
    %793 = vmatprep.subr.mxu0 0.0
    %794 = vmatpush1.msra.mxu0 0.0
    %795 = vmatprep.subr.mxu0 0.0
    %796 = vmatpush1.msra.mxu0 0.0
    %797 = vmatprep.subr.mxu0 0.0
    %798 = vmatpush1.msra.mxu0 0.0
    %799 = vmatprep.subr.mxu0 %v772
    %800 = vmatpush1.msra.mxu0 %v771
    %801 = vmatprep.subr.mxu0 %v768
    %802 = vmatpush1.msra.mxu0 %v767
    %803 = vmatprep.subr.mxu0 %v764
    %804 = vmatpush1.msra.mxu0 %v763
    %805 = vmatprep.subr.mxu0 %v760
    %806 = vmatpush1.msra.mxu0 %v759
    %807 = vmatprep.subr.mxu0 %v756
    %808 = vmatpush1.msra.mxu0 %v755
    %809 = vmatprep.subr.mxu0 %v752
    %810 = vmatpush1.msra.mxu0 %v751
    %811 = vmatprep.subr.mxu0 %v748
    %812 = vmatpush1.msra.mxu0 %v747
    %813 = vmatprep.subr.mxu0 %v744
    %814 = vmatpush1.msra.mxu0 %v743
    %815 = vmatprep.subr.mxu0 %v740
    %816 = vmatpush1.msra.mxu0 %v739
    %817 = vmatprep.subr.mxu0 0.0
    %818 = vmatpush2.msra.mxu0 0.0
    %819 = vmatprep.subr.mxu0 0.0
    %820 = vmatpush2.msra.mxu0 0.0
    %821 = vmatprep.subr.mxu0 0.0
    %822 = vmatpush2.msra.mxu0 0.0
    %823 = vmatprep.subr.mxu0 0.0
    %824 = vmatpush2.msra.mxu0 0.0
    %825 = vmatprep.subr.mxu0 0.0
    %826 = vmatpush2.msra.mxu0 0.0
    %827 = vmatprep.subr.mxu0 0.0
    %828 = vmatpush2.msra.mxu0 0.0
    %829 = vmatprep.subr.mxu0 0.0
    %830 = vmatpush2.msra.mxu0 0.0
    %831 = vmatprep.subr.mxu0 0.0
    %832 = vmatpush2.msra.mxu0 0.0
    %833 = vmatprep.subr.mxu0 0.0
    %834 = vmatpush2.msra.mxu0 0.0
    %835 = vmatprep.subr.mxu0 0.0
    %836 = vmatpush2.msra.mxu0 0.0
    %837 = vmatprep.subr.mxu0 0.0
    %838 = vmatpush2.msra.mxu0 0.0
    %839 = vmatprep.subr.mxu0 0.0
    %840 = vmatpush2.msra.mxu0 0.0
    %841 = vmatprep.subr.mxu0 0.0
    %842 = vmatpush2.msra.mxu0 0.0
    %843 = vmatprep.subr.mxu0 0.0
    %844 = vmatpush2.msra.mxu0 0.0
    %845 = vmatprep.subr.mxu0 0.0
    %846 = vmatpush2.msra.mxu0 0.0
    %847 = vmatprep.subr.mxu0 0.0
    %848 = vmatpush2.msra.mxu0 0.0
    %849 = vmatprep.mubr.f32.mxu0 0.0
    %850 = vmatmul.mubr.f32.gmra.mxu0 %v783
    %v851 = vpop.f32.mrf.mxu0
    %v852 = vadd.f32 %v779, %v851
    %v853 = vpop.f32.mrf.mxu0
    %v854 = vadd.f32 %v779, %v853
    %855 = vdwg.mxu0
    %856 = vmatprep.subr.mxu0 0.0
    %857 = vmatpush1.msra.mxu0 0.0
    %858 = vmatprep.subr.mxu0 0.0
    %859 = vmatpush1.msra.mxu0 0.0
    %860 = vmatprep.subr.mxu0 0.0
    %861 = vmatpush1.msra.mxu0 0.0
    %862 = vmatprep.subr.mxu0 0.0
    %863 = vmatpush1.msra.mxu0 0.0
    %864 = vmatprep.subr.mxu0 0.0
    %865 = vmatpush1.msra.mxu0 0.0
    %866 = vmatprep.subr.mxu0 0.0
    %867 = vmatpush1.msra.mxu0 0.0
    %868 = vmatprep.subr.mxu0 0.0
    %869 = vmatpush1.msra.mxu0 0.0
    %870 = vmatprep.subr.mxu0 %v774
    %871 = vmatpush1.msra.mxu0 %v773
    %872 = vmatprep.subr.mxu0 %v770
    %873 = vmatpush1.msra.mxu0 %v769
    %874 = vmatprep.subr.mxu0 %v766
    %875 = vmatpush1.msra.mxu0 %v765
    %876 = vmatprep.subr.mxu0 %v762
    %877 = vmatpush1.msra.mxu0 %v761
    %878 = vmatprep.subr.mxu0 %v758
    %879 = vmatpush1.msra.mxu0 %v757
    %880 = vmatprep.subr.mxu0 %v754
    %881 = vmatpush1.msra.mxu0 %v753
    %882 = vmatprep.subr.mxu0 %v750
    %883 = vmatpush1.msra.mxu0 %v749
    %884 = vmatprep.subr.mxu0 %v746
    %885 = vmatpush1.msra.mxu0 %v745
    %886 = vmatprep.subr.mxu0 %v742
    %887 = vmatpush1.msra.mxu0 %v741
    %888 = vmatprep.subr.mxu0 0.0
    %889 = vmatpush2.msra.mxu0 0.0
    %890 = vmatprep.subr.mxu0 0.0
    %891 = vmatpush2.msra.mxu0 0.0
    %892 = vmatprep.subr.mxu0 0.0
    %893 = vmatpush2.msra.mxu0 0.0
    %894 = vmatprep.subr.mxu0 0.0
    %895 = vmatpush2.msra.mxu0 0.0
    %896 = vmatprep.subr.mxu0 0.0
    %897 = vmatpush2.msra.mxu0 0.0
    %898 = vmatprep.subr.mxu0 0.0
    %899 = vmatpush2.msra.mxu0 0.0
    %900 = vmatprep.subr.mxu0 0.0
    %901 = vmatpush2.msra.mxu0 0.0
    %902 = vmatprep.subr.mxu0 0.0
    %903 = vmatpush2.msra.mxu0 0.0
    %904 = vmatprep.subr.mxu0 0.0
    %905 = vmatpush2.msra.mxu0 0.0
    %906 = vmatprep.subr.mxu0 0.0
    %907 = vmatpush2.msra.mxu0 0.0
    %908 = vmatprep.subr.mxu0 0.0
    %909 = vmatpush2.msra.mxu0 0.0
    %910 = vmatprep.subr.mxu0 0.0
    %911 = vmatpush2.msra.mxu0 0.0
    %912 = vmatprep.subr.mxu0 0.0
    %913 = vmatpush2.msra.mxu0 0.0
    %914 = vmatprep.subr.mxu0 0.0
    %915 = vmatpush2.msra.mxu0 0.0
    %916 = vmatprep.subr.mxu0 0.0
    %917 = vmatpush2.msra.mxu0 0.0
    %918 = vmatprep.subr.mxu0 0.0
    %919 = vmatpush2.msra.mxu0 0.0
    %920 = vmatprep.mubr.f32.mxu0 0.0
    %921 = vmatmul.mubr.f32.gmra.mxu0 %v783
    %v922 = vpop.f32.mrf.mxu0
    %v923 = vadd.f32 %v779, %v922
    %v924 = vpop.f32.mrf.mxu0
    %v925 = vadd.f32 %v779, %v924
    %926 = vdwg.mxu0
    %v927 = vld [vmem:[%s6] sm:$0xff]
    %vm928 = vcmp.gt.f32.partialorder %v852, 0.0
    %vm929 = vcmp.gt.f32.partialorder %v854, 0.0
    %vm930 = vcmp.gt.f32.partialorder %v923, 0.0
    %vm931 = vcmp.gt.f32.partialorder %v925, 0.0
    %933 = vset.pattern.permute.xlu0 0
    %934 = vperm.xlu0 %933, %v927
    %v935 = vpop.permute.xlu0 %934
    %v937 = vmul.f32 %v935, %v852
    %v938 = vmul.f32 %v935, %v854
    %v939 = vmul.f32 %v935, %v923
    %v940 = vmul.f32 %v935, %v925
    %v941 = vsel %vm928, %v852, %v937
    %v942 = vsel %vm929, %v854, %v938
    %v943 = vsel %vm930, %v923, %v939
    %v944 = vsel %vm931, %v925, %v940
    %945 = vst [vmem:[#allocation4 + $0x20] sm:$0xff] %v941
    %946 = vst [vmem:[#allocation4 + $0x28] sm:$0xff] %v942
    %947 = vst [vmem:[#allocation4 + $0x30] sm:$0xff] %v943
    %948 = vst [vmem:[#allocation4 + $0x38] sm:$0xff] %v944
    %949 = vrot.lane.b32.xlu0 %v337, 34
    %v950 = vpop.permute.xlu0 %949
    %951 = vrot.lane.b32.xlu0 %v338, 34
    %v952 = vpop.permute.xlu0 %951
    %953 = vrot.lane.b32.xlu0 %v339, 34
    %v954 = vpop.permute.xlu0 %953
    %955 = vrot.lane.b32.xlu0 %v340, 34
    %v956 = vpop.permute.xlu0 %955
    %vm957 = vcmp.lt.s32.totalorder %v362, 34
    %v958 = vsel %vm957, %v954, %v956
    %v959 = vsel %vm957, %v952, %v954
    %v960 = vsel %vm957, %v950, %v952
    %v961 = vsel %vm957, %v956, %v950
    %v962 = vld [vmem:[%s7] sm:$0xf]
    %v964 = vlaneseq
    %v965 = vshrl.u32 %v964, 7
    %v966 = vsub.s32 0, %v965
    %v967 = vrot.slane %v962, %v966
    %v968 = vlaneseq
    %v969 = vshrl.u32 %v968, 7
    %v970 = vsub.s32 1, %v969
    %v971 = vrot.slane %v962, %v970
    %v972 = vlaneseq
    %v973 = vshrl.u32 %v972, 7
    %v974 = vsub.s32 2, %v973
    %v975 = vrot.slane %v962, %v974
    %v976 = vlaneseq
    %v977 = vshrl.u32 %v976, 7
    %v978 = vsub.s32 3, %v977
    %v979 = vrot.slane %v962, %v978
    %v984 = vmul.f32 %v961, %v967
    %v985 = vmul.f32 %v960, %v971
    %v986 = vmul.f32 %v959, %v975
    %v987 = vmul.f32 %v958, %v979
    %988 = vst [vmem:[#allocation3] sm:$0xff] %v984
    %989 = vst [vmem:[#allocation3 + $0x8] sm:$0xff] %v985
    %990 = vst [vmem:[#allocation3 + $0x10] sm:$0xff] %v986
    %991 = vst [vmem:[#allocation3 + $0x18] sm:$0xff] %v987
    %992 = vrot.lane.b32.xlu0 %v337, 33
    %v993 = vpop.permute.xlu0 %992
    %994 = vrot.lane.b32.xlu0 %v338, 33
    %v995 = vpop.permute.xlu0 %994
    %996 = vrot.lane.b32.xlu0 %v339, 33
    %v997 = vpop.permute.xlu0 %996
    %998 = vrot.lane.b32.xlu0 %v340, 33
    %v999 = vpop.permute.xlu0 %998
    %vm1000 = vcmp.lt.s32.totalorder %v362, 33
    %v1001 = vsel %vm1000, %v997, %v999
    %v1002 = vsel %vm1000, %v995, %v997
    %v1003 = vsel %vm1000, %v993, %v995
    %v1004 = vsel %vm1000, %v999, %v993
    %s1005 = scalar_lea.vmem %s7, 4
    %v1006 = vld [vmem:[%s1005] sm:$0xf]
    %v1008 = vlaneseq
    %v1009 = vshrl.u32 %v1008, 7
    %v1010 = vsub.s32 0, %v1009
    %v1011 = vrot.slane %v1006, %v1010
    %v1012 = vlaneseq
    %v1013 = vshrl.u32 %v1012, 7
    %v1014 = vsub.s32 1, %v1013
    %v1015 = vrot.slane %v1006, %v1014
    %v1016 = vlaneseq
    %v1017 = vshrl.u32 %v1016, 7
    %v1018 = vsub.s32 2, %v1017
    %v1019 = vrot.slane %v1006, %v1018
    %v1020 = vlaneseq
    %v1021 = vshrl.u32 %v1020, 7
    %v1022 = vsub.s32 3, %v1021
    %v1023 = vrot.slane %v1006, %v1022
    %v1028 = vmul.f32 %v1004, %v1011
    %v1029 = vmul.f32 %v1003, %v1015
    %v1030 = vmul.f32 %v1002, %v1019
    %v1031 = vmul.f32 %v1001, %v1023
    %1032 = vst [vmem:[#allocation3 + $0x20] sm:$0xff] %v1028
    %1033 = vst [vmem:[#allocation3 + $0x28] sm:$0xff] %v1029
    %1034 = vst [vmem:[#allocation3 + $0x30] sm:$0xff] %v1030
    %1035 = vst [vmem:[#allocation3 + $0x38] sm:$0xff] %v1031
    %1036 = vrot.lane.b32.xlu0 %v337, 32
    %v1037 = vpop.permute.xlu0 %1036
    %1038 = vrot.lane.b32.xlu0 %v338, 32
    %v1039 = vpop.permute.xlu0 %1038
    %1040 = vrot.lane.b32.xlu0 %v339, 32
    %v1041 = vpop.permute.xlu0 %1040
    %1042 = vrot.lane.b32.xlu0 %v340, 32
    %v1043 = vpop.permute.xlu0 %1042
    %vm1044 = vcmp.lt.s32.totalorder %v362, 32
    %v1045 = vsel %vm1044, %v1041, %v1043
    %v1046 = vsel %vm1044, %v1039, %v1041
    %v1047 = vsel %vm1044, %v1037, %v1039
    %v1048 = vsel %vm1044, %v1043, %v1037
    %s1049 = scalar_lea.vmem %s7, 8
    %v1050 = vld [vmem:[%s1049] sm:$0xf]
    %v1052 = vlaneseq
    %v1053 = vshrl.u32 %v1052, 7
    %v1054 = vsub.s32 0, %v1053
    %v1055 = vrot.slane %v1050, %v1054
    %v1056 = vlaneseq
    %v1057 = vshrl.u32 %v1056, 7
    %v1058 = vsub.s32 1, %v1057
    %v1059 = vrot.slane %v1050, %v1058
    %v1060 = vlaneseq
    %v1061 = vshrl.u32 %v1060, 7
    %v1062 = vsub.s32 2, %v1061
    %v1063 = vrot.slane %v1050, %v1062
    %v1064 = vlaneseq
    %v1065 = vshrl.u32 %v1064, 7
    %v1066 = vsub.s32 3, %v1065
    %v1067 = vrot.slane %v1050, %v1066
    %v1072 = vmul.f32 %v1048, %v1055
    %v1073 = vmul.f32 %v1047, %v1059
    %v1074 = vmul.f32 %v1046, %v1063
    %v1075 = vmul.f32 %v1045, %v1067
    %1076 = vst [vmem:[#allocation3 + $0x40] sm:$0xff] %v1072
    %1077 = vst [vmem:[#allocation3 + $0x48] sm:$0xff] %v1073
    %1078 = vst [vmem:[#allocation3 + $0x50] sm:$0xff] %v1074
    %1079 = vst [vmem:[#allocation3 + $0x58] sm:$0xff] %v1075
    %1080 = vrot.lane.b32.xlu0 %v337, 31
    %v1081 = vpop.permute.xlu0 %1080
    %1082 = vrot.lane.b32.xlu0 %v338, 31
    %v1083 = vpop.permute.xlu0 %1082
    %1084 = vrot.lane.b32.xlu0 %v339, 31
    %v1085 = vpop.permute.xlu0 %1084
    %1086 = vrot.lane.b32.xlu0 %v340, 31
    %v1087 = vpop.permute.xlu0 %1086
    %vm1088 = vcmp.lt.s32.totalorder %v362, 31
    %v1089 = vsel %vm1088, %v1085, %v1087
    %v1090 = vsel %vm1088, %v1083, %v1085
    %v1091 = vsel %vm1088, %v1081, %v1083
    %v1092 = vsel %vm1088, %v1087, %v1081
    %s1093 = scalar_lea.vmem %s7, 12
    %v1094 = vld [vmem:[%s1093] sm:$0xf]
    %v1096 = vlaneseq
    %v1097 = vshrl.u32 %v1096, 7
    %v1098 = vsub.s32 0, %v1097
    %v1099 = vrot.slane %v1094, %v1098
    %v1100 = vlaneseq
    %v1101 = vshrl.u32 %v1100, 7
    %v1102 = vsub.s32 1, %v1101
    %v1103 = vrot.slane %v1094, %v1102
    %v1104 = vlaneseq
    %v1105 = vshrl.u32 %v1104, 7
    %v1106 = vsub.s32 2, %v1105
    %v1107 = vrot.slane %v1094, %v1106
    %v1108 = vlaneseq
    %v1109 = vshrl.u32 %v1108, 7
    %v1110 = vsub.s32 3, %v1109
    %v1111 = vrot.slane %v1094, %v1110
    %v1116 = vmul.f32 %v1092, %v1099
    %v1117 = vmul.f32 %v1091, %v1103
    %v1118 = vmul.f32 %v1090, %v1107
    %v1119 = vmul.f32 %v1089, %v1111
    %1120 = vst [vmem:[#allocation3 + $0x60] sm:$0xff] %v1116
    %1121 = vst [vmem:[#allocation3 + $0x68] sm:$0xff] %v1117
    %1122 = vst [vmem:[#allocation3 + $0x70] sm:$0xff] %v1118
    %1123 = vst [vmem:[#allocation3 + $0x78] sm:$0xff] %v1119
    %1124 = vrot.lane.b32.xlu0 %v337, 30
    %v1125 = vpop.permute.xlu0 %1124
    %1126 = vrot.lane.b32.xlu0 %v338, 30
    %v1127 = vpop.permute.xlu0 %1126
    %1128 = vrot.lane.b32.xlu0 %v339, 30
    %v1129 = vpop.permute.xlu0 %1128
    %1130 = vrot.lane.b32.xlu0 %v340, 30
    %v1131 = vpop.permute.xlu0 %1130
    %vm1132 = vcmp.lt.s32.totalorder %v362, 30
    %v1133 = vsel %vm1132, %v1129, %v1131
    %v1134 = vsel %vm1132, %v1127, %v1129
    %v1135 = vsel %vm1132, %v1125, %v1127
    %v1136 = vsel %vm1132, %v1131, %v1125
    %s1137 = scalar_lea.vmem %s7, 16
    %v1138 = vld [vmem:[%s1137] sm:$0xf]
    %v1140 = vlaneseq
    %v1141 = vshrl.u32 %v1140, 7
    %v1142 = vsub.s32 0, %v1141
    %v1143 = vrot.slane %v1138, %v1142
    %v1144 = vlaneseq
    %v1145 = vshrl.u32 %v1144, 7
    %v1146 = vsub.s32 1, %v1145
    %v1147 = vrot.slane %v1138, %v1146
    %v1148 = vlaneseq
    %v1149 = vshrl.u32 %v1148, 7
    %v1150 = vsub.s32 2, %v1149
    %v1151 = vrot.slane %v1138, %v1150
    %v1152 = vlaneseq
    %v1153 = vshrl.u32 %v1152, 7
    %v1154 = vsub.s32 3, %v1153
    %v1155 = vrot.slane %v1138, %v1154
    %v1160 = vmul.f32 %v1136, %v1143
    %v1161 = vmul.f32 %v1135, %v1147
    %v1162 = vmul.f32 %v1134, %v1151
    %v1163 = vmul.f32 %v1133, %v1155
    %1164 = vst [vmem:[#allocation3 + $0x80] sm:$0xff] %v1160
    %1165 = vst [vmem:[#allocation3 + $0x88] sm:$0xff] %v1161
    %1166 = vst [vmem:[#allocation3 + $0x90] sm:$0xff] %v1162
    %1167 = vst [vmem:[#allocation3 + $0x98] sm:$0xff] %v1163
    %1168 = vrot.lane.b32.xlu0 %v337, 18
    %v1169 = vpop.permute.xlu0 %1168
    %1170 = vrot.lane.b32.xlu0 %v338, 18
    %v1171 = vpop.permute.xlu0 %1170
    %1172 = vrot.lane.b32.xlu0 %v339, 18
    %v1173 = vpop.permute.xlu0 %1172
    %1174 = vrot.lane.b32.xlu0 %v340, 18
    %v1175 = vpop.permute.xlu0 %1174
    %vm1176 = vcmp.lt.s32.totalorder %v362, 18
    %v1177 = vsel %vm1176, %v1173, %v1175
    %v1178 = vsel %vm1176, %v1171, %v1173
    %v1179 = vsel %vm1176, %v1169, %v1171
    %v1180 = vsel %vm1176, %v1175, %v1169
    %s1181 = scalar_lea.vmem %s7, 20
    %v1182 = vld [vmem:[%s1181] sm:$0xf]
    %v1184 = vlaneseq
    %v1185 = vshrl.u32 %v1184, 7
    %v1186 = vsub.s32 0, %v1185
    %v1187 = vrot.slane %v1182, %v1186
    %v1188 = vlaneseq
    %v1189 = vshrl.u32 %v1188, 7
    %v1190 = vsub.s32 1, %v1189
    %v1191 = vrot.slane %v1182, %v1190
    %v1192 = vlaneseq
    %v1193 = vshrl.u32 %v1192, 7
    %v1194 = vsub.s32 2, %v1193
    %v1195 = vrot.slane %v1182, %v1194
    %v1196 = vlaneseq
    %v1197 = vshrl.u32 %v1196, 7
    %v1198 = vsub.s32 3, %v1197
    %v1199 = vrot.slane %v1182, %v1198
    %v1204 = vmul.f32 %v1180, %v1187
    %v1205 = vmul.f32 %v1179, %v1191
    %v1206 = vmul.f32 %v1178, %v1195
    %v1207 = vmul.f32 %v1177, %v1199
    %1208 = vst [vmem:[#allocation3 + $0xa0] sm:$0xff] %v1204
    %1209 = vst [vmem:[#allocation3 + $0xa8] sm:$0xff] %v1205
    %1210 = vst [vmem:[#allocation3 + $0xb0] sm:$0xff] %v1206
    %1211 = vst [vmem:[#allocation3 + $0xb8] sm:$0xff] %v1207
    %1212 = vrot.lane.b32.xlu0 %v337, 17
    %v1213 = vpop.permute.xlu0 %1212
    %1214 = vrot.lane.b32.xlu0 %v338, 17
    %v1215 = vpop.permute.xlu0 %1214
    %1216 = vrot.lane.b32.xlu0 %v339, 17
    %v1217 = vpop.permute.xlu0 %1216
    %1218 = vrot.lane.b32.xlu0 %v340, 17
    %v1219 = vpop.permute.xlu0 %1218
    %v1220 = vsel %vm363, %v1217, %v1219
    %v1221 = vsel %vm363, %v1215, %v1217
    %v1222 = vsel %vm363, %v1213, %v1215
    %v1223 = vsel %vm363, %v1219, %v1213
    %v1224 = vld [vmem:[%s368] sm:$0xf]
    %v1226 = vlaneseq
    %v1227 = vshrl.u32 %v1226, 7
    %v1228 = vsub.s32 0, %v1227
    %v1229 = vrot.slane %v1224, %v1228
    %v1230 = vlaneseq
    %v1231 = vshrl.u32 %v1230, 7
    %v1232 = vsub.s32 1, %v1231
    %v1233 = vrot.slane %v1224, %v1232
    %v1234 = vlaneseq
    %v1235 = vshrl.u32 %v1234, 7
    %v1236 = vsub.s32 2, %v1235
    %v1237 = vrot.slane %v1224, %v1236
    %v1238 = vlaneseq
    %v1239 = vshrl.u32 %v1238, 7
    %v1240 = vsub.s32 3, %v1239
    %v1241 = vrot.slane %v1224, %v1240
    %v1246 = vmul.f32 %v1223, %v1229
    %v1247 = vmul.f32 %v1222, %v1233
    %v1248 = vmul.f32 %v1221, %v1237
    %v1249 = vmul.f32 %v1220, %v1241
    %1250 = vst [vmem:[#allocation3 + $0xc0] sm:$0xff] %v1246
    %1251 = vst [vmem:[#allocation3 + $0xc8] sm:$0xff] %v1247
    %1252 = vst [vmem:[#allocation3 + $0xd0] sm:$0xff] %v1248
    %1253 = vst [vmem:[#allocation3 + $0xd8] sm:$0xff] %v1249
    %1254 = vrot.lane.b32.xlu0 %v337, 16
    %v1255 = vpop.permute.xlu0 %1254
    %1256 = vrot.lane.b32.xlu0 %v338, 16
    %v1257 = vpop.permute.xlu0 %1256
    %1258 = vrot.lane.b32.xlu0 %v339, 16
    %v1259 = vpop.permute.xlu0 %1258
    %1260 = vrot.lane.b32.xlu0 %v340, 16
    %v1261 = vpop.permute.xlu0 %1260
    %v1262 = vsel %vm407, %v1259, %v1261
    %v1263 = vsel %vm407, %v1257, %v1259
    %v1264 = vsel %vm407, %v1255, %v1257
    %v1265 = vsel %vm407, %v1261, %v1255
    %v1266 = vld [vmem:[%s412] sm:$0xf]
    %v1268 = vlaneseq
    %v1269 = vshrl.u32 %v1268, 7
    %v1270 = vsub.s32 0, %v1269
    %v1271 = vrot.slane %v1266, %v1270
    %v1272 = vlaneseq
    %v1273 = vshrl.u32 %v1272, 7
    %v1274 = vsub.s32 1, %v1273
    %v1275 = vrot.slane %v1266, %v1274
    %v1276 = vlaneseq
    %v1277 = vshrl.u32 %v1276, 7
    %v1278 = vsub.s32 2, %v1277
    %v1279 = vrot.slane %v1266, %v1278
    %v1280 = vlaneseq
    %v1281 = vshrl.u32 %v1280, 7
    %v1282 = vsub.s32 3, %v1281
    %v1283 = vrot.slane %v1266, %v1282
    %v1288 = vmul.f32 %v1265, %v1271
    %v1289 = vmul.f32 %v1264, %v1275
    %v1290 = vmul.f32 %v1263, %v1279
    %v1291 = vmul.f32 %v1262, %v1283
    %1292 = vst [vmem:[#allocation3 + $0xe0] sm:$0xff] %v1288
    %1293 = vst [vmem:[#allocation3 + $0xe8] sm:$0xff] %v1289
    %1294 = vst [vmem:[#allocation3 + $0xf0] sm:$0xff] %v1290
    %1295 = vst [vmem:[#allocation3 + $0xf8] sm:$0xff] %v1291
    %1296 = vrot.lane.b32.xlu0 %v337, 15
    %v1297 = vpop.permute.xlu0 %1296
    %1298 = vrot.lane.b32.xlu0 %v338, 15
    %v1299 = vpop.permute.xlu0 %1298
    %1300 = vrot.lane.b32.xlu0 %v339, 15
    %v1301 = vpop.permute.xlu0 %1300
    %1302 = vrot.lane.b32.xlu0 %v340, 15
    %v1303 = vpop.permute.xlu0 %1302
    %v1304 = vsel %vm451, %v1301, %v1303
    %v1305 = vsel %vm451, %v1299, %v1301
    %v1306 = vsel %vm451, %v1297, %v1299
    %v1307 = vsel %vm451, %v1303, %v1297
    %v1308 = vld [vmem:[%s456] sm:$0xf]
    %v1310 = vlaneseq
    %v1311 = vshrl.u32 %v1310, 7
    %v1312 = vsub.s32 0, %v1311
    %v1313 = vrot.slane %v1308, %v1312
    %v1314 = vlaneseq
    %v1315 = vshrl.u32 %v1314, 7
    %v1316 = vsub.s32 1, %v1315
    %v1317 = vrot.slane %v1308, %v1316
    %v1318 = vlaneseq
    %v1319 = vshrl.u32 %v1318, 7
    %v1320 = vsub.s32 2, %v1319
    %v1321 = vrot.slane %v1308, %v1320
    %v1322 = vlaneseq
    %v1323 = vshrl.u32 %v1322, 7
    %v1324 = vsub.s32 3, %v1323
    %v1325 = vrot.slane %v1308, %v1324
    %v1330 = vmul.f32 %v1307, %v1313
    %v1331 = vmul.f32 %v1306, %v1317
    %v1332 = vmul.f32 %v1305, %v1321
    %v1333 = vmul.f32 %v1304, %v1325
    %1334 = vst [vmem:[#allocation3 + $0x100] sm:$0xff] %v1330
    %1335 = vst [vmem:[#allocation3 + $0x108] sm:$0xff] %v1331
    %1336 = vst [vmem:[#allocation3 + $0x110] sm:$0xff] %v1332
    %1337 = vst [vmem:[#allocation3 + $0x118] sm:$0xff] %v1333
    %1338 = vrot.lane.b32.xlu0 %v337, 14
    %v1339 = vpop.permute.xlu0 %1338
    %1340 = vrot.lane.b32.xlu0 %v338, 14
    %v1341 = vpop.permute.xlu0 %1340
    %1342 = vrot.lane.b32.xlu0 %v339, 14
    %v1343 = vpop.permute.xlu0 %1342
    %1344 = vrot.lane.b32.xlu0 %v340, 14
    %v1345 = vpop.permute.xlu0 %1344
    %vm1346 = vcmp.lt.s32.totalorder %v362, 14
    %v1347 = vsel %vm1346, %v1343, %v1345
    %v1348 = vsel %vm1346, %v1341, %v1343
    %v1349 = vsel %vm1346, %v1339, %v1341
    %v1350 = vsel %vm1346, %v1345, %v1339
    %s1351 = scalar_lea.vmem %s7, 36
    %v1352 = vld [vmem:[%s1351] sm:$0xf]
    %v1354 = vlaneseq
    %v1355 = vshrl.u32 %v1354, 7
    %v1356 = vsub.s32 0, %v1355
    %v1357 = vrot.slane %v1352, %v1356
    %v1358 = vlaneseq
    %v1359 = vshrl.u32 %v1358, 7
    %v1360 = vsub.s32 1, %v1359
    %v1361 = vrot.slane %v1352, %v1360
    %v1362 = vlaneseq
    %v1363 = vshrl.u32 %v1362, 7
    %v1364 = vsub.s32 2, %v1363
    %v1365 = vrot.slane %v1352, %v1364
    %v1366 = vlaneseq
    %v1367 = vshrl.u32 %v1366, 7
    %v1368 = vsub.s32 3, %v1367
    %v1369 = vrot.slane %v1352, %v1368
    %v1374 = vmul.f32 %v1350, %v1357
    %v1375 = vmul.f32 %v1349, %v1361
    %v1376 = vmul.f32 %v1348, %v1365
    %v1377 = vmul.f32 %v1347, %v1369
    %1378 = vst [vmem:[#allocation3 + $0x120] sm:$0xff] %v1374
    %1379 = vst [vmem:[#allocation3 + $0x128] sm:$0xff] %v1375
    %1380 = vst [vmem:[#allocation3 + $0x130] sm:$0xff] %v1376
    %1381 = vst [vmem:[#allocation3 + $0x138] sm:$0xff] %v1377
    %1382 = vrot.lane.b32.xlu0 %v337, 2
    %v1383 = vpop.permute.xlu0 %1382
    %1384 = vrot.lane.b32.xlu0 %v338, 2
    %v1385 = vpop.permute.xlu0 %1384
    %1386 = vrot.lane.b32.xlu0 %v339, 2
    %v1387 = vpop.permute.xlu0 %1386
    %1388 = vrot.lane.b32.xlu0 %v340, 2
    %v1389 = vpop.permute.xlu0 %1388
    %vm1390 = vcmp.lt.s32.totalorder %v362, 2
    %v1391 = vsel %vm1390, %v1387, %v1389
    %v1392 = vsel %vm1390, %v1385, %v1387
    %v1393 = vsel %vm1390, %v1383, %v1385
    %v1394 = vsel %vm1390, %v1389, %v1383
    %s1395 = scalar_lea.vmem %s7, 40
    %v1396 = vld [vmem:[%s1395] sm:$0xf]
    %v1398 = vlaneseq
    %v1399 = vshrl.u32 %v1398, 7
    %v1400 = vsub.s32 0, %v1399
    %v1401 = vrot.slane %v1396, %v1400
    %v1402 = vlaneseq
    %v1403 = vshrl.u32 %v1402, 7
    %v1404 = vsub.s32 1, %v1403
    %v1405 = vrot.slane %v1396, %v1404
    %v1406 = vlaneseq
    %v1407 = vshrl.u32 %v1406, 7
    %v1408 = vsub.s32 2, %v1407
    %v1409 = vrot.slane %v1396, %v1408
    %v1410 = vlaneseq
    %v1411 = vshrl.u32 %v1410, 7
    %v1412 = vsub.s32 3, %v1411
    %v1413 = vrot.slane %v1396, %v1412
    %v1418 = vmul.f32 %v1394, %v1401
    %v1419 = vmul.f32 %v1393, %v1405
    %v1420 = vmul.f32 %v1392, %v1409
    %v1421 = vmul.f32 %v1391, %v1413
    %1422 = vst [vmem:[#allocation3 + $0x140] sm:$0xff] %v1418
    %1423 = vst [vmem:[#allocation3 + $0x148] sm:$0xff] %v1419
    %1424 = vst [vmem:[#allocation3 + $0x150] sm:$0xff] %v1420
    %1425 = vst [vmem:[#allocation3 + $0x158] sm:$0xff] %v1421
    %1426 = vrot.lane.b32.xlu0 %v337, 1
    %v1427 = vpop.permute.xlu0 %1426
    %1428 = vrot.lane.b32.xlu0 %v338, 1
    %v1429 = vpop.permute.xlu0 %1428
    %1430 = vrot.lane.b32.xlu0 %v339, 1
    %v1431 = vpop.permute.xlu0 %1430
    %1432 = vrot.lane.b32.xlu0 %v340, 1
    %v1433 = vpop.permute.xlu0 %1432
    %v1434 = vsel %vm495, %v1431, %v1433
    %v1435 = vsel %vm495, %v1429, %v1431
    %v1436 = vsel %vm495, %v1427, %v1429
    %v1437 = vsel %vm495, %v1433, %v1427
    %v1438 = vld [vmem:[%s500] sm:$0xf]
    %v1440 = vlaneseq
    %v1441 = vshrl.u32 %v1440, 7
    %v1442 = vsub.s32 0, %v1441
    %v1443 = vrot.slane %v1438, %v1442
    %v1444 = vlaneseq
    %v1445 = vshrl.u32 %v1444, 7
    %v1446 = vsub.s32 1, %v1445
    %v1447 = vrot.slane %v1438, %v1446
    %v1448 = vlaneseq
    %v1449 = vshrl.u32 %v1448, 7
    %v1450 = vsub.s32 2, %v1449
    %v1451 = vrot.slane %v1438, %v1450
    %v1452 = vlaneseq
    %v1453 = vshrl.u32 %v1452, 7
    %v1454 = vsub.s32 3, %v1453
    %v1455 = vrot.slane %v1438, %v1454
    %v1460 = vmul.f32 %v1437, %v1443
    %v1461 = vmul.f32 %v1436, %v1447
    %v1462 = vmul.f32 %v1435, %v1451
    %v1463 = vmul.f32 %v1434, %v1455
    %1464 = vst [vmem:[#allocation3 + $0x160] sm:$0xff] %v1460
    %1465 = vst [vmem:[#allocation3 + $0x168] sm:$0xff] %v1461
    %1466 = vst [vmem:[#allocation3 + $0x170] sm:$0xff] %v1462
    %1467 = vst [vmem:[#allocation3 + $0x178] sm:$0xff] %v1463
    %v1468 = vld [vmem:[%s531] sm:$0xf]
    %v1470 = vlaneseq
    %v1471 = vshrl.u32 %v1470, 7
    %v1472 = vsub.s32 0, %v1471
    %v1473 = vrot.slane %v1468, %v1472
    %v1474 = vlaneseq
    %v1475 = vshrl.u32 %v1474, 7
    %v1476 = vsub.s32 1, %v1475
    %v1477 = vrot.slane %v1468, %v1476
    %v1478 = vlaneseq
    %v1479 = vshrl.u32 %v1478, 7
    %v1480 = vsub.s32 2, %v1479
    %v1481 = vrot.slane %v1468, %v1480
    %v1482 = vlaneseq
    %v1483 = vshrl.u32 %v1482, 7
    %v1484 = vsub.s32 3, %v1483
    %v1485 = vrot.slane %v1468, %v1484
    %v1490 = vmul.f32 %v337, %v1473
    %v1491 = vmul.f32 %v338, %v1477
    %v1492 = vmul.f32 %v339, %v1481
    %v1493 = vmul.f32 %v340, %v1485
    %1494 = vst [vmem:[#allocation3 + $0x180] sm:$0xff] %v1490
    %1495 = vst [vmem:[#allocation3 + $0x188] sm:$0xff] %v1491
    %1496 = vst [vmem:[#allocation3 + $0x190] sm:$0xff] %v1492
    %1497 = vst [vmem:[#allocation3 + $0x198] sm:$0xff] %v1493
    %1498 = vrot.lane.b32.xlu0 %v337, 127
    %v1499 = vpop.permute.xlu0 %1498
    %1500 = vrot.lane.b32.xlu0 %v338, 127
    %v1501 = vpop.permute.xlu0 %1500
    %1502 = vrot.lane.b32.xlu0 %v339, 127
    %v1503 = vpop.permute.xlu0 %1502
    %1504 = vrot.lane.b32.xlu0 %v340, 127
    %v1505 = vpop.permute.xlu0 %1504
    %v1506 = vsel %vm570, %v1503, %v1505
    %v1507 = vsel %vm570, %v1501, %v1503
    %v1508 = vsel %vm570, %v1499, %v1501
    %v1509 = vsel %vm570, %v1505, %v1499
    %v1510 = vld [vmem:[%s575] sm:$0xf]
    %v1512 = vlaneseq
    %v1513 = vshrl.u32 %v1512, 7
    %v1514 = vsub.s32 0, %v1513
    %v1515 = vrot.slane %v1510, %v1514
    %v1516 = vlaneseq
    %v1517 = vshrl.u32 %v1516, 7
    %v1518 = vsub.s32 1, %v1517
    %v1519 = vrot.slane %v1510, %v1518
    %v1520 = vlaneseq
    %v1521 = vshrl.u32 %v1520, 7
    %v1522 = vsub.s32 2, %v1521
    %v1523 = vrot.slane %v1510, %v1522
    %v1524 = vlaneseq
    %v1525 = vshrl.u32 %v1524, 7
    %v1526 = vsub.s32 3, %v1525
    %v1527 = vrot.slane %v1510, %v1526
    %v1532 = vmul.f32 %v1508, %v1515
    %v1533 = vmul.f32 %v1507, %v1519
    %v1534 = vmul.f32 %v1506, %v1523
    %v1535 = vmul.f32 %v1509, %v1527
    %1536 = vst [vmem:[#allocation3 + $0x1a0] sm:$0xff] %v1532
    %1537 = vst [vmem:[#allocation3 + $0x1a8] sm:$0xff] %v1533
    %1538 = vst [vmem:[#allocation3 + $0x1b0] sm:$0xff] %v1534
    %1539 = vst [vmem:[#allocation3 + $0x1b8] sm:$0xff] %v1535
    %1540 = vrot.lane.b32.xlu0 %v337, 126
    %v1541 = vpop.permute.xlu0 %1540
    %1542 = vrot.lane.b32.xlu0 %v338, 126
    %v1543 = vpop.permute.xlu0 %1542
    %1544 = vrot.lane.b32.xlu0 %v339, 126
    %v1545 = vpop.permute.xlu0 %1544
    %1546 = vrot.lane.b32.xlu0 %v340, 126
    %v1547 = vpop.permute.xlu0 %1546
    %vm1548 = vcmp.lt.s32.totalorder %v362, 126
    %v1549 = vsel %vm1548, %v1545, %v1547
    %v1550 = vsel %vm1548, %v1543, %v1545
    %v1551 = vsel %vm1548, %v1541, %v1543
    %v1552 = vsel %vm1548, %v1547, %v1541
    %s1553 = scalar_lea.vmem %s7, 56
    %v1554 = vld [vmem:[%s1553] sm:$0xf]
    %v1556 = vlaneseq
    %v1557 = vshrl.u32 %v1556, 7
    %v1558 = vsub.s32 0, %v1557
    %v1559 = vrot.slane %v1554, %v1558
    %v1560 = vlaneseq
    %v1561 = vshrl.u32 %v1560, 7
    %v1562 = vsub.s32 1, %v1561
    %v1563 = vrot.slane %v1554, %v1562
    %v1564 = vlaneseq
    %v1565 = vshrl.u32 %v1564, 7
    %v1566 = vsub.s32 2, %v1565
    %v1567 = vrot.slane %v1554, %v1566
    %v1568 = vlaneseq
    %v1569 = vshrl.u32 %v1568, 7
    %v1570 = vsub.s32 3, %v1569
    %v1571 = vrot.slane %v1554, %v1570
    %v1576 = vmul.f32 %v1551, %v1559
    %v1577 = vmul.f32 %v1550, %v1563
    %v1578 = vmul.f32 %v1549, %v1567
    %v1579 = vmul.f32 %v1552, %v1571
    %1580 = vst [vmem:[#allocation3 + $0x1c0] sm:$0xff] %v1576
    %1581 = vst [vmem:[#allocation3 + $0x1c8] sm:$0xff] %v1577
    %1582 = vst [vmem:[#allocation3 + $0x1d0] sm:$0xff] %v1578
    %1583 = vst [vmem:[#allocation3 + $0x1d8] sm:$0xff] %v1579
    %1584 = vrot.lane.b32.xlu0 %v337, 114
    %v1585 = vpop.permute.xlu0 %1584
    %1586 = vrot.lane.b32.xlu0 %v338, 114
    %v1587 = vpop.permute.xlu0 %1586
    %1588 = vrot.lane.b32.xlu0 %v339, 114
    %v1589 = vpop.permute.xlu0 %1588
    %1590 = vrot.lane.b32.xlu0 %v340, 114
    %v1591 = vpop.permute.xlu0 %1590
    %vm1592 = vcmp.lt.s32.totalorder %v362, 114
    %v1593 = vsel %vm1592, %v1589, %v1591
    %v1594 = vsel %vm1592, %v1587, %v1589
    %v1595 = vsel %vm1592, %v1585, %v1587
    %v1596 = vsel %vm1592, %v1591, %v1585
    %s1597 = scalar_lea.vmem %s7, 60
    %v1598 = vld [vmem:[%s1597] sm:$0xf]
    %v1600 = vlaneseq
    %v1601 = vshrl.u32 %v1600, 7
    %v1602 = vsub.s32 0, %v1601
    %v1603 = vrot.slane %v1598, %v1602
    %v1604 = vlaneseq
    %v1605 = vshrl.u32 %v1604, 7
    %v1606 = vsub.s32 1, %v1605
    %v1607 = vrot.slane %v1598, %v1606
    %v1608 = vlaneseq
    %v1609 = vshrl.u32 %v1608, 7
    %v1610 = vsub.s32 2, %v1609
    %v1611 = vrot.slane %v1598, %v1610
    %v1612 = vlaneseq
    %v1613 = vshrl.u32 %v1612, 7
    %v1614 = vsub.s32 3, %v1613
    %v1615 = vrot.slane %v1598, %v1614
    %v1620 = vmul.f32 %v1595, %v1603
    %v1621 = vmul.f32 %v1594, %v1607
    %v1622 = vmul.f32 %v1593, %v1611
    %v1623 = vmul.f32 %v1596, %v1615
    %1624 = vst [vmem:[#allocation3 + $0x1e0] sm:$0xff] %v1620
    %1625 = vst [vmem:[#allocation3 + $0x1e8] sm:$0xff] %v1621
    %1626 = vst [vmem:[#allocation3 + $0x1f0] sm:$0xff] %v1622
    %1627 = vst [vmem:[#allocation3 + $0x1f8] sm:$0xff] %v1623
    %1628 = vrot.lane.b32.xlu0 %v337, 113
    %v1629 = vpop.permute.xlu0 %1628
    %1630 = vrot.lane.b32.xlu0 %v338, 113
    %v1631 = vpop.permute.xlu0 %1630
    %1632 = vrot.lane.b32.xlu0 %v339, 113
    %v1633 = vpop.permute.xlu0 %1632
    %1634 = vrot.lane.b32.xlu0 %v340, 113
    %v1635 = vpop.permute.xlu0 %1634
    %v1636 = vsel %vm614, %v1633, %v1635
    %v1637 = vsel %vm614, %v1631, %v1633
    %v1638 = vsel %vm614, %v1629, %v1631
    %v1639 = vsel %vm614, %v1635, %v1629
    %v1640 = vld [vmem:[%s619] sm:$0xf]
    %v1642 = vlaneseq
    %v1643 = vshrl.u32 %v1642, 7
    %v1644 = vsub.s32 0, %v1643
    %v1645 = vrot.slane %v1640, %v1644
    %v1646 = vlaneseq
    %v1647 = vshrl.u32 %v1646, 7
    %v1648 = vsub.s32 1, %v1647
    %v1649 = vrot.slane %v1640, %v1648
    %v1650 = vlaneseq
    %v1651 = vshrl.u32 %v1650, 7
    %v1652 = vsub.s32 2, %v1651
    %v1653 = vrot.slane %v1640, %v1652
    %v1654 = vlaneseq
    %v1655 = vshrl.u32 %v1654, 7
    %v1656 = vsub.s32 3, %v1655
    %v1657 = vrot.slane %v1640, %v1656
    %v1662 = vmul.f32 %v1638, %v1645
    %v1663 = vmul.f32 %v1637, %v1649
    %v1664 = vmul.f32 %v1636, %v1653
    %v1665 = vmul.f32 %v1639, %v1657
    %1666 = vst [vmem:[#allocation3 + $0x200] sm:$0xff] %v1662
    %1667 = vst [vmem:[#allocation3 + $0x208] sm:$0xff] %v1663
    %1668 = vst [vmem:[#allocation3 + $0x210] sm:$0xff] %v1664
    %1669 = vst [vmem:[#allocation3 + $0x218] sm:$0xff] %v1665
    %1670 = vrot.lane.b32.xlu0 %v337, 112
    %v1671 = vpop.permute.xlu0 %1670
    %1672 = vrot.lane.b32.xlu0 %v338, 112
    %v1673 = vpop.permute.xlu0 %1672
    %1674 = vrot.lane.b32.xlu0 %v339, 112
    %v1675 = vpop.permute.xlu0 %1674
    %1676 = vrot.lane.b32.xlu0 %v340, 112
    %v1677 = vpop.permute.xlu0 %1676
    %v1678 = vsel %vm658, %v1675, %v1677
    %v1679 = vsel %vm658, %v1673, %v1675
    %v1680 = vsel %vm658, %v1671, %v1673
    %v1681 = vsel %vm658, %v1677, %v1671
    %v1682 = vld [vmem:[%s663] sm:$0xf]
    %v1684 = vlaneseq
    %v1685 = vshrl.u32 %v1684, 7
    %v1686 = vsub.s32 0, %v1685
    %v1687 = vrot.slane %v1682, %v1686
    %v1688 = vlaneseq
    %v1689 = vshrl.u32 %v1688, 7
    %v1690 = vsub.s32 1, %v1689
    %v1691 = vrot.slane %v1682, %v1690
    %v1692 = vlaneseq
    %v1693 = vshrl.u32 %v1692, 7
    %v1694 = vsub.s32 2, %v1693
    %v1695 = vrot.slane %v1682, %v1694
    %v1696 = vlaneseq
    %v1697 = vshrl.u32 %v1696, 7
    %v1698 = vsub.s32 3, %v1697
    %v1699 = vrot.slane %v1682, %v1698
    %v1704 = vmul.f32 %v1680, %v1687
    %v1705 = vmul.f32 %v1679, %v1691
    %v1706 = vmul.f32 %v1678, %v1695
    %v1707 = vmul.f32 %v1681, %v1699
    %1708 = vst [vmem:[#allocation3 + $0x220] sm:$0xff] %v1704
    %1709 = vst [vmem:[#allocation3 + $0x228] sm:$0xff] %v1705
    %1710 = vst [vmem:[#allocation3 + $0x230] sm:$0xff] %v1706
    %1711 = vst [vmem:[#allocation3 + $0x238] sm:$0xff] %v1707
    %1712 = vrot.lane.b32.xlu0 %v337, 111
    %v1713 = vpop.permute.xlu0 %1712
    %1714 = vrot.lane.b32.xlu0 %v338, 111
    %v1715 = vpop.permute.xlu0 %1714
    %1716 = vrot.lane.b32.xlu0 %v339, 111
    %v1717 = vpop.permute.xlu0 %1716
    %1718 = vrot.lane.b32.xlu0 %v340, 111
    %v1719 = vpop.permute.xlu0 %1718
    %v1720 = vsel %vm702, %v1717, %v1719
    %v1721 = vsel %vm702, %v1715, %v1717
    %v1722 = vsel %vm702, %v1713, %v1715
    %v1723 = vsel %vm702, %v1719, %v1713
    %v1724 = vld [vmem:[%s707] sm:$0xf]
    %v1726 = vlaneseq
    %v1727 = vshrl.u32 %v1726, 7
    %v1728 = vsub.s32 0, %v1727
    %v1729 = vrot.slane %v1724, %v1728
    %v1730 = vlaneseq
    %v1731 = vshrl.u32 %v1730, 7
    %v1732 = vsub.s32 1, %v1731
    %v1733 = vrot.slane %v1724, %v1732
    %v1734 = vlaneseq
    %v1735 = vshrl.u32 %v1734, 7
    %v1736 = vsub.s32 2, %v1735
    %v1737 = vrot.slane %v1724, %v1736
    %v1738 = vlaneseq
    %v1739 = vshrl.u32 %v1738, 7
    %v1740 = vsub.s32 3, %v1739
    %v1741 = vrot.slane %v1724, %v1740
    %v1746 = vmul.f32 %v1722, %v1729
    %v1747 = vmul.f32 %v1721, %v1733
    %v1748 = vmul.f32 %v1720, %v1737
    %v1749 = vmul.f32 %v1723, %v1741
    %1750 = vst [vmem:[#allocation3 + $0x240] sm:$0xff] %v1746
    %1751 = vst [vmem:[#allocation3 + $0x248] sm:$0xff] %v1747
    %1752 = vst [vmem:[#allocation3 + $0x250] sm:$0xff] %v1748
    %1753 = vst [vmem:[#allocation3 + $0x258] sm:$0xff] %v1749
    %1754 = vrot.lane.b32.xlu0 %v337, 110
    %v1755 = vpop.permute.xlu0 %1754
    %1756 = vrot.lane.b32.xlu0 %v338, 110
    %v1757 = vpop.permute.xlu0 %1756
    %1758 = vrot.lane.b32.xlu0 %v339, 110
    %v1759 = vpop.permute.xlu0 %1758
    %1760 = vrot.lane.b32.xlu0 %v340, 110
    %v1761 = vpop.permute.xlu0 %1760
    %vm1762 = vcmp.lt.s32.totalorder %v362, 110
    %v1763 = vsel %vm1762, %v1759, %v1761
    %v1764 = vsel %vm1762, %v1757, %v1759
    %v1765 = vsel %vm1762, %v1755, %v1757
    %v1766 = vsel %vm1762, %v1761, %v1755
    %s1767 = scalar_lea.vmem %s7, 76
    %v1768 = vld [vmem:[%s1767] sm:$0xf]
    %v1770 = vlaneseq
    %v1771 = vshrl.u32 %v1770, 7
    %v1772 = vsub.s32 0, %v1771
    %v1773 = vrot.slane %v1768, %v1772
    %v1774 = vlaneseq
    %v1775 = vshrl.u32 %v1774, 7
    %v1776 = vsub.s32 1, %v1775
    %v1777 = vrot.slane %v1768, %v1776
    %v1778 = vlaneseq
    %v1779 = vshrl.u32 %v1778, 7
    %v1780 = vsub.s32 2, %v1779
    %v1781 = vrot.slane %v1768, %v1780
    %v1782 = vlaneseq
    %v1783 = vshrl.u32 %v1782, 7
    %v1784 = vsub.s32 3, %v1783
    %v1785 = vrot.slane %v1768, %v1784
    %v1790 = vmul.f32 %v1765, %v1773
    %v1791 = vmul.f32 %v1764, %v1777
    %v1792 = vmul.f32 %v1763, %v1781
    %v1793 = vmul.f32 %v1766, %v1785
    %1794 = vst [vmem:[#allocation3 + $0x260] sm:$0xff] %v1790
    %1795 = vst [vmem:[#allocation3 + $0x268] sm:$0xff] %v1791
    %1796 = vst [vmem:[#allocation3 + $0x270] sm:$0xff] %v1792
    %1797 = vst [vmem:[#allocation3 + $0x278] sm:$0xff] %v1793
    %1798 = vrot.lane.b32.xlu0 %v337, 98
    %v1799 = vpop.permute.xlu0 %1798
    %1800 = vrot.lane.b32.xlu0 %v338, 98
    %v1801 = vpop.permute.xlu0 %1800
    %1802 = vrot.lane.b32.xlu0 %v339, 98
    %v1803 = vpop.permute.xlu0 %1802
    %1804 = vrot.lane.b32.xlu0 %v340, 98
    %v1805 = vpop.permute.xlu0 %1804
    %vm1806 = vcmp.lt.s32.totalorder %v362, 98
    %v1807 = vsel %vm1806, %v1803, %v1805
    %v1808 = vsel %vm1806, %v1801, %v1803
    %v1809 = vsel %vm1806, %v1799, %v1801
    %v1810 = vsel %vm1806, %v1805, %v1799
    %s1811 = scalar_lea.vmem %s7, 80
    %v1812 = vld [vmem:[%s1811] sm:$0xf]
    %v1814 = vlaneseq
    %v1815 = vshrl.u32 %v1814, 7
    %v1816 = vsub.s32 0, %v1815
    %v1817 = vrot.slane %v1812, %v1816
    %v1818 = vlaneseq
    %v1819 = vshrl.u32 %v1818, 7
    %v1820 = vsub.s32 1, %v1819
    %v1821 = vrot.slane %v1812, %v1820
    %v1822 = vlaneseq
    %v1823 = vshrl.u32 %v1822, 7
    %v1824 = vsub.s32 2, %v1823
    %v1825 = vrot.slane %v1812, %v1824
    %v1826 = vlaneseq
    %v1827 = vshrl.u32 %v1826, 7
    %v1828 = vsub.s32 3, %v1827
    %v1829 = vrot.slane %v1812, %v1828
    %v1834 = vmul.f32 %v1809, %v1817
    %v1835 = vmul.f32 %v1808, %v1821
    %v1836 = vmul.f32 %v1807, %v1825
    %v1837 = vmul.f32 %v1810, %v1829
    %1838 = vst [vmem:[#allocation3 + $0x280] sm:$0xff] %v1834
    %1839 = vst [vmem:[#allocation3 + $0x288] sm:$0xff] %v1835
    %1840 = vst [vmem:[#allocation3 + $0x290] sm:$0xff] %v1836
    %1841 = vst [vmem:[#allocation3 + $0x298] sm:$0xff] %v1837
    %1842 = vrot.lane.b32.xlu0 %v337, 97
    %v1843 = vpop.permute.xlu0 %1842
    %1844 = vrot.lane.b32.xlu0 %v338, 97
    %v1845 = vpop.permute.xlu0 %1844
    %1846 = vrot.lane.b32.xlu0 %v339, 97
    %v1847 = vpop.permute.xlu0 %1846
    %1848 = vrot.lane.b32.xlu0 %v340, 97
    %v1849 = vpop.permute.xlu0 %1848
    %vm1850 = vcmp.lt.s32.totalorder %v362, 97
    %v1851 = vsel %vm1850, %v1847, %v1849
    %v1852 = vsel %vm1850, %v1845, %v1847
    %v1853 = vsel %vm1850, %v1843, %v1845
    %v1854 = vsel %vm1850, %v1849, %v1843
    %s1855 = scalar_lea.vmem %s7, 84
    %v1856 = vld [vmem:[%s1855] sm:$0xf]
    %v1858 = vlaneseq
    %v1859 = vshrl.u32 %v1858, 7
    %v1860 = vsub.s32 0, %v1859
    %v1861 = vrot.slane %v1856, %v1860
    %v1862 = vlaneseq
    %v1863 = vshrl.u32 %v1862, 7
    %v1864 = vsub.s32 1, %v1863
    %v1865 = vrot.slane %v1856, %v1864
    %v1866 = vlaneseq
    %v1867 = vshrl.u32 %v1866, 7
    %v1868 = vsub.s32 2, %v1867
    %v1869 = vrot.slane %v1856, %v1868
    %v1870 = vlaneseq
    %v1871 = vshrl.u32 %v1870, 7
    %v1872 = vsub.s32 3, %v1871
    %v1873 = vrot.slane %v1856, %v1872
    %v1878 = vmul.f32 %v1853, %v1861
    %v1879 = vmul.f32 %v1852, %v1865
    %v1880 = vmul.f32 %v1851, %v1869
    %v1881 = vmul.f32 %v1854, %v1873
    %1882 = vst [vmem:[#allocation3 + $0x2a0] sm:$0xff] %v1878
    %1883 = vst [vmem:[#allocation3 + $0x2a8] sm:$0xff] %v1879
    %1884 = vst [vmem:[#allocation3 + $0x2b0] sm:$0xff] %v1880
    %1885 = vst [vmem:[#allocation3 + $0x2b8] sm:$0xff] %v1881
    %1886 = vrot.lane.b32.xlu0 %v337, 96
    %v1887 = vpop.permute.xlu0 %1886
    %1888 = vrot.lane.b32.xlu0 %v338, 96
    %v1889 = vpop.permute.xlu0 %1888
    %1890 = vrot.lane.b32.xlu0 %v339, 96
    %v1891 = vpop.permute.xlu0 %1890
    %1892 = vrot.lane.b32.xlu0 %v340, 96
    %v1893 = vpop.permute.xlu0 %1892
    %vm1894 = vcmp.lt.s32.totalorder %v362, 96
    %v1895 = vsel %vm1894, %v1891, %v1893
    %v1896 = vsel %vm1894, %v1889, %v1891
    %v1897 = vsel %vm1894, %v1887, %v1889
    %v1898 = vsel %vm1894, %v1893, %v1887
    %s1899 = scalar_lea.vmem %s7, 88
    %v1900 = vld [vmem:[%s1899] sm:$0xf]
    %v1902 = vlaneseq
    %v1903 = vshrl.u32 %v1902, 7
    %v1904 = vsub.s32 0, %v1903
    %v1905 = vrot.slane %v1900, %v1904
    %v1906 = vlaneseq
    %v1907 = vshrl.u32 %v1906, 7
    %v1908 = vsub.s32 1, %v1907
    %v1909 = vrot.slane %v1900, %v1908
    %v1910 = vlaneseq
    %v1911 = vshrl.u32 %v1910, 7
    %v1912 = vsub.s32 2, %v1911
    %v1913 = vrot.slane %v1900, %v1912
    %v1914 = vlaneseq
    %v1915 = vshrl.u32 %v1914, 7
    %v1916 = vsub.s32 3, %v1915
    %v1917 = vrot.slane %v1900, %v1916
    %v1922 = vmul.f32 %v1897, %v1905
    %v1923 = vmul.f32 %v1896, %v1909
    %v1924 = vmul.f32 %v1895, %v1913
    %v1925 = vmul.f32 %v1898, %v1917
    %1926 = vst [vmem:[#allocation3 + $0x2c0] sm:$0xff] %v1922
    %1927 = vst [vmem:[#allocation3 + $0x2c8] sm:$0xff] %v1923
    %1928 = vst [vmem:[#allocation3 + $0x2d0] sm:$0xff] %v1924
    %1929 = vst [vmem:[#allocation3 + $0x2d8] sm:$0xff] %v1925
    %1930 = vrot.lane.b32.xlu0 %v337, 95
    %v1931 = vpop.permute.xlu0 %1930
    %1932 = vrot.lane.b32.xlu0 %v338, 95
    %v1933 = vpop.permute.xlu0 %1932
    %1934 = vrot.lane.b32.xlu0 %v339, 95
    %v1935 = vpop.permute.xlu0 %1934
    %1936 = vrot.lane.b32.xlu0 %v340, 95
    %v1937 = vpop.permute.xlu0 %1936
    %vm1938 = vcmp.lt.s32.totalorder %v362, 95
    %v1939 = vsel %vm1938, %v1935, %v1937
    %v1940 = vsel %vm1938, %v1933, %v1935
    %v1941 = vsel %vm1938, %v1931, %v1933
    %v1942 = vsel %vm1938, %v1937, %v1931
    %s1943 = scalar_lea.vmem %s7, 92
    %v1944 = vld [vmem:[%s1943] sm:$0xf]
    %v1946 = vlaneseq
    %v1947 = vshrl.u32 %v1946, 7
    %v1948 = vsub.s32 0, %v1947
    %v1949 = vrot.slane %v1944, %v1948
    %v1950 = vlaneseq
    %v1951 = vshrl.u32 %v1950, 7
    %v1952 = vsub.s32 1, %v1951
    %v1953 = vrot.slane %v1944, %v1952
    %v1954 = vlaneseq
    %v1955 = vshrl.u32 %v1954, 7
    %v1956 = vsub.s32 2, %v1955
    %v1957 = vrot.slane %v1944, %v1956
    %v1958 = vlaneseq
    %v1959 = vshrl.u32 %v1958, 7
    %v1960 = vsub.s32 3, %v1959
    %v1961 = vrot.slane %v1944, %v1960
    %v1966 = vmul.f32 %v1941, %v1949
    %v1967 = vmul.f32 %v1940, %v1953
    %v1968 = vmul.f32 %v1939, %v1957
    %v1969 = vmul.f32 %v1942, %v1961
    %1970 = vst [vmem:[#allocation3 + $0x2e0] sm:$0xff] %v1966
    %1971 = vst [vmem:[#allocation3 + $0x2e8] sm:$0xff] %v1967
    %1972 = vst [vmem:[#allocation3 + $0x2f0] sm:$0xff] %v1968
    %1973 = vst [vmem:[#allocation3 + $0x2f8] sm:$0xff] %v1969
    %1974 = vrot.lane.b32.xlu0 %v337, 94
    %v1975 = vpop.permute.xlu0 %1974
    %1976 = vrot.lane.b32.xlu0 %v338, 94
    %v1977 = vpop.permute.xlu0 %1976
    %1978 = vrot.lane.b32.xlu0 %v339, 94
    %v1979 = vpop.permute.xlu0 %1978
    %1980 = vrot.lane.b32.xlu0 %v340, 94
    %v1981 = vpop.permute.xlu0 %1980
    %vm1982 = vcmp.lt.s32.totalorder %v362, 94
    %v1983 = vsel %vm1982, %v1979, %v1981
    %v1984 = vsel %vm1982, %v1977, %v1979
    %v1985 = vsel %vm1982, %v1975, %v1977
    %v1986 = vsel %vm1982, %v1981, %v1975
    %s1987 = scalar_lea.vmem %s7, 96
    %v1988 = vld [vmem:[%s1987] sm:$0xf]
    %v1990 = vlaneseq
    %v1991 = vshrl.u32 %v1990, 7
    %v1992 = vsub.s32 0, %v1991
    %v1993 = vrot.slane %v1988, %v1992
    %v1994 = vlaneseq
    %v1995 = vshrl.u32 %v1994, 7
    %v1996 = vsub.s32 1, %v1995
    %v1997 = vrot.slane %v1988, %v1996
    %v1998 = vlaneseq
    %v1999 = vshrl.u32 %v1998, 7
    %v2000 = vsub.s32 2, %v1999
    %v2001 = vrot.slane %v1988, %v2000
    %v2002 = vlaneseq
    %v2003 = vshrl.u32 %v2002, 7
    %v2004 = vsub.s32 3, %v2003
    %v2005 = vrot.slane %v1988, %v2004
    %v2010 = vmul.f32 %v1985, %v1993
    %v2011 = vmul.f32 %v1984, %v1997
    %v2012 = vmul.f32 %v1983, %v2001
    %v2013 = vmul.f32 %v1986, %v2005
    %2014 = vst [vmem:[#allocation3 + $0x300] sm:$0xff] %v2010
    %2015 = vst [vmem:[#allocation3 + $0x308] sm:$0xff] %v2011
    %2016 = vst [vmem:[#allocation3 + $0x310] sm:$0xff] %v2012
    %2017 = vst [vmem:[#allocation3 + $0x318] sm:$0xff] %v2013
    %v2018 = vld [vmem:[%s8] sm:$0xff]
    %v2019 = vld [vmem:[%s8 + $0x8] sm:$0xff]
    %v2020 = vld [vmem:[#allocation3] sm:$0xff]
    %v2021 = vld [vmem:[#allocation3 + $0x8] sm:$0xff]
    %v2022 = vld [vmem:[#allocation3 + $0x10] sm:$0xff]
    %v2023 = vld [vmem:[#allocation3 + $0x18] sm:$0xff]
    %v2024 = vld [vmem:[#allocation3 + $0x20] sm:$0xff]
    %v2025 = vld [vmem:[#allocation3 + $0x28] sm:$0xff]
    %v2026 = vld [vmem:[#allocation3 + $0x30] sm:$0xff]
    %v2027 = vld [vmem:[#allocation3 + $0x38] sm:$0xff]
    %v2028 = vld [vmem:[#allocation3 + $0x40] sm:$0xff]
    %v2029 = vld [vmem:[#allocation3 + $0x48] sm:$0xff]
    %v2030 = vld [vmem:[#allocation3 + $0x50] sm:$0xff]
    %v2031 = vld [vmem:[#allocation3 + $0x58] sm:$0xff]
    %v2032 = vld [vmem:[#allocation3 + $0x60] sm:$0xff]
    %v2033 = vld [vmem:[#allocation3 + $0x68] sm:$0xff]
    %v2034 = vld [vmem:[#allocation3 + $0x70] sm:$0xff]
    %v2035 = vld [vmem:[#allocation3 + $0x78] sm:$0xff]
    %v2036 = vld [vmem:[#allocation3 + $0x80] sm:$0xff]
    %v2037 = vld [vmem:[#allocation3 + $0x88] sm:$0xff]
    %v2038 = vld [vmem:[#allocation3 + $0x90] sm:$0xff]
    %v2039 = vld [vmem:[#allocation3 + $0x98] sm:$0xff]
    %v2040 = vld [vmem:[#allocation3 + $0xa0] sm:$0xff]
    %v2041 = vld [vmem:[#allocation3 + $0xa8] sm:$0xff]
    %v2042 = vld [vmem:[#allocation3 + $0xb0] sm:$0xff]
    %v2043 = vld [vmem:[#allocation3 + $0xb8] sm:$0xff]
    %v2044 = vld [vmem:[#allocation3 + $0xc0] sm:$0xff]
    %v2045 = vld [vmem:[#allocation3 + $0xc8] sm:$0xff]
    %v2046 = vld [vmem:[#allocation3 + $0xd0] sm:$0xff]
    %v2047 = vld [vmem:[#allocation3 + $0xd8] sm:$0xff]
    %v2048 = vld [vmem:[#allocation3 + $0xe0] sm:$0xff]
    %v2049 = vld [vmem:[#allocation3 + $0xe8] sm:$0xff]
    %v2050 = vld [vmem:[#allocation3 + $0xf0] sm:$0xff]
    %v2051 = vld [vmem:[#allocation3 + $0xf8] sm:$0xff]
    %v2052 = vld [vmem:[#allocation3 + $0x100] sm:$0xff]
    %v2053 = vld [vmem:[#allocation3 + $0x108] sm:$0xff]
    %v2054 = vld [vmem:[#allocation3 + $0x110] sm:$0xff]
    %v2055 = vld [vmem:[#allocation3 + $0x118] sm:$0xff]
    %v2056 = vld [vmem:[#allocation3 + $0x120] sm:$0xff]
    %v2057 = vld [vmem:[#allocation3 + $0x128] sm:$0xff]
    %v2058 = vld [vmem:[#allocation3 + $0x130] sm:$0xff]
    %v2059 = vld [vmem:[#allocation3 + $0x138] sm:$0xff]
    %v2060 = vld [vmem:[#allocation3 + $0x140] sm:$0xff]
    %v2061 = vld [vmem:[#allocation3 + $0x148] sm:$0xff]
    %v2062 = vld [vmem:[#allocation3 + $0x150] sm:$0xff]
    %v2063 = vld [vmem:[#allocation3 + $0x158] sm:$0xff]
    %v2064 = vld [vmem:[#allocation3 + $0x160] sm:$0xff]
    %v2065 = vld [vmem:[#allocation3 + $0x168] sm:$0xff]
    %v2066 = vld [vmem:[#allocation3 + $0x170] sm:$0xff]
    %v2067 = vld [vmem:[#allocation3 + $0x178] sm:$0xff]
    %v2068 = vld [vmem:[#allocation3 + $0x180] sm:$0xff]
    %v2069 = vld [vmem:[#allocation3 + $0x188] sm:$0xff]
    %v2070 = vld [vmem:[#allocation3 + $0x190] sm:$0xff]
    %v2071 = vld [vmem:[#allocation3 + $0x198] sm:$0xff]
    %v2072 = vld [vmem:[#allocation3 + $0x1a0] sm:$0xff]
    %v2073 = vld [vmem:[#allocation3 + $0x1a8] sm:$0xff]
    %v2074 = vld [vmem:[#allocation3 + $0x1b0] sm:$0xff]
    %v2075 = vld [vmem:[#allocation3 + $0x1b8] sm:$0xff]
    %v2076 = vld [vmem:[#allocation3 + $0x1c0] sm:$0xff]
    %v2077 = vld [vmem:[#allocation3 + $0x1c8] sm:$0xff]
    %v2078 = vld [vmem:[#allocation3 + $0x1d0] sm:$0xff]
    %v2079 = vld [vmem:[#allocation3 + $0x1d8] sm:$0xff]
    %v2080 = vld [vmem:[#allocation3 + $0x1e0] sm:$0xff]
    %v2081 = vld [vmem:[#allocation3 + $0x1e8] sm:$0xff]
    %v2082 = vld [vmem:[#allocation3 + $0x1f0] sm:$0xff]
    %v2083 = vld [vmem:[#allocation3 + $0x1f8] sm:$0xff]
    %v2084 = vld [vmem:[#allocation3 + $0x200] sm:$0xff]
    %v2085 = vld [vmem:[#allocation3 + $0x208] sm:$0xff]
    %v2086 = vld [vmem:[#allocation3 + $0x210] sm:$0xff]
    %v2087 = vld [vmem:[#allocation3 + $0x218] sm:$0xff]
    %v2088 = vld [vmem:[#allocation3 + $0x220] sm:$0xff]
    %v2089 = vld [vmem:[#allocation3 + $0x228] sm:$0xff]
    %v2090 = vld [vmem:[#allocation3 + $0x230] sm:$0xff]
    %v2091 = vld [vmem:[#allocation3 + $0x238] sm:$0xff]
    %v2092 = vld [vmem:[#allocation3 + $0x240] sm:$0xff]
    %v2093 = vld [vmem:[#allocation3 + $0x248] sm:$0xff]
    %v2094 = vld [vmem:[#allocation3 + $0x250] sm:$0xff]
    %v2095 = vld [vmem:[#allocation3 + $0x258] sm:$0xff]
    %v2096 = vld [vmem:[#allocation3 + $0x260] sm:$0xff]
    %v2097 = vld [vmem:[#allocation3 + $0x268] sm:$0xff]
    %v2098 = vld [vmem:[#allocation3 + $0x270] sm:$0xff]
    %v2099 = vld [vmem:[#allocation3 + $0x278] sm:$0xff]
    %v2100 = vld [vmem:[#allocation3 + $0x280] sm:$0xff]
    %v2101 = vld [vmem:[#allocation3 + $0x288] sm:$0xff]
    %v2102 = vld [vmem:[#allocation3 + $0x290] sm:$0xff]
    %v2103 = vld [vmem:[#allocation3 + $0x298] sm:$0xff]
    %v2104 = vld [vmem:[#allocation3 + $0x2a0] sm:$0xff]
    %v2105 = vld [vmem:[#allocation3 + $0x2a8] sm:$0xff]
    %v2106 = vld [vmem:[#allocation3 + $0x2b0] sm:$0xff]
    %v2107 = vld [vmem:[#allocation3 + $0x2b8] sm:$0xff]
    %v2108 = vld [vmem:[#allocation3 + $0x2c0] sm:$0xff]
    %v2109 = vld [vmem:[#allocation3 + $0x2c8] sm:$0xff]
    %v2110 = vld [vmem:[#allocation3 + $0x2d0] sm:$0xff]
    %v2111 = vld [vmem:[#allocation3 + $0x2d8] sm:$0xff]
    %v2112 = vld [vmem:[#allocation3 + $0x2e0] sm:$0xff]
    %v2113 = vld [vmem:[#allocation3 + $0x2e8] sm:$0xff]
    %v2114 = vld [vmem:[#allocation3 + $0x2f0] sm:$0xff]
    %v2115 = vld [vmem:[#allocation3 + $0x2f8] sm:$0xff]
    %v2116 = vld [vmem:[#allocation3 + $0x300] sm:$0xff]
    %v2117 = vld [vmem:[#allocation3 + $0x308] sm:$0xff]
    %v2118 = vld [vmem:[#allocation3 + $0x310] sm:$0xff]
    %v2119 = vld [vmem:[#allocation3 + $0x318] sm:$0xff]
    %v2120 = vld [vmem:[%s9] sm:$0xff]
    %2122 = vset.pattern.permute.xlu0 0
    %2123 = vperm.xlu0 %2122, %v2120
    %v2124 = vpop.permute.xlu0 %2123
    %v2127 = vsel %vm781, %v2019, 0
    %2129 = vmatprep.subr.mxu0 %v2081
    %2130 = vmatpush1.msra.mxu0 %v2080
    %2131 = vmatprep.subr.mxu0 %v2077
    %2132 = vmatpush1.msra.mxu0 %v2076
    %2133 = vmatprep.subr.mxu0 %v2073
    %2134 = vmatpush1.msra.mxu0 %v2072
    %2135 = vmatprep.subr.mxu0 %v2069
    %2136 = vmatpush1.msra.mxu0 %v2068
    %2137 = vmatprep.subr.mxu0 %v2065
    %2138 = vmatpush1.msra.mxu0 %v2064
    %2139 = vmatprep.subr.mxu0 %v2061
    %2140 = vmatpush1.msra.mxu0 %v2060
    %2141 = vmatprep.subr.mxu0 %v2057
    %2142 = vmatpush1.msra.mxu0 %v2056
    %2143 = vmatprep.subr.mxu0 %v2053
    %2144 = vmatpush1.msra.mxu0 %v2052
    %2145 = vmatprep.subr.mxu0 %v2049
    %2146 = vmatpush1.msra.mxu0 %v2048
    %2147 = vmatprep.subr.mxu0 %v2045
    %2148 = vmatpush1.msra.mxu0 %v2044
    %2149 = vmatprep.subr.mxu0 %v2041
    %2150 = vmatpush1.msra.mxu0 %v2040
    %2151 = vmatprep.subr.mxu0 %v2037
    %2152 = vmatpush1.msra.mxu0 %v2036
    %2153 = vmatprep.subr.mxu0 %v2033
    %2154 = vmatpush1.msra.mxu0 %v2032
    %2155 = vmatprep.subr.mxu0 %v2029
    %2156 = vmatpush1.msra.mxu0 %v2028
    %2157 = vmatprep.subr.mxu0 %v2025
    %2158 = vmatpush1.msra.mxu0 %v2024
    %2159 = vmatprep.subr.mxu0 %v2021
    %2160 = vmatpush1.msra.mxu0 %v2020
    %2161 = vmatprep.subr.mxu0 0.0
    %2162 = vmatpush2.msra.mxu0 0.0
    %2163 = vmatprep.subr.mxu0 0.0
    %2164 = vmatpush2.msra.mxu0 0.0
    %2165 = vmatprep.subr.mxu0 0.0
    %2166 = vmatpush2.msra.mxu0 0.0
    %2167 = vmatprep.subr.mxu0 0.0
    %2168 = vmatpush2.msra.mxu0 0.0
    %2169 = vmatprep.subr.mxu0 0.0
    %2170 = vmatpush2.msra.mxu0 0.0
    %2171 = vmatprep.subr.mxu0 0.0
    %2172 = vmatpush2.msra.mxu0 0.0
    %2173 = vmatprep.subr.mxu0 0.0
    %2174 = vmatpush2.msra.mxu0 0.0
    %2175 = vmatprep.subr.mxu0 %v2117
    %2176 = vmatpush2.msra.mxu0 %v2116
    %2177 = vmatprep.subr.mxu0 %v2113
    %2178 = vmatpush2.msra.mxu0 %v2112
    %2179 = vmatprep.subr.mxu0 %v2109
    %2180 = vmatpush2.msra.mxu0 %v2108
    %2181 = vmatprep.subr.mxu0 %v2105
    %2182 = vmatpush2.msra.mxu0 %v2104
    %2183 = vmatprep.subr.mxu0 %v2101
    %2184 = vmatpush2.msra.mxu0 %v2100
    %2185 = vmatprep.subr.mxu0 %v2097
    %2186 = vmatpush2.msra.mxu0 %v2096
    %2187 = vmatprep.subr.mxu0 %v2093
    %2188 = vmatpush2.msra.mxu0 %v2092
    %2189 = vmatprep.subr.mxu0 %v2089
    %2190 = vmatpush2.msra.mxu0 %v2088
    %2191 = vmatprep.subr.mxu0 %v2085
    %2192 = vmatpush2.msra.mxu0 %v2084
    %2193 = vmatprep.mubr.f32.mxu0 %v2127
    %2194 = vmatmul.mubr.f32.gmra.mxu0 %v2018
    %v2195 = vpop.f32.mrf.mxu0
    %v2196 = vadd.f32 %v2124, %v2195
    %v2197 = vpop.f32.mrf.mxu0
    %v2198 = vadd.f32 %v2124, %v2197
    %2199 = vdwg.mxu0
    %2200 = vmatprep.subr.mxu0 %v2083
    %2201 = vmatpush1.msra.mxu0 %v2082
    %2202 = vmatprep.subr.mxu0 %v2079
    %2203 = vmatpush1.msra.mxu0 %v2078
    %2204 = vmatprep.subr.mxu0 %v2075
    %2205 = vmatpush1.msra.mxu0 %v2074
    %2206 = vmatprep.subr.mxu0 %v2071
    %2207 = vmatpush1.msra.mxu0 %v2070
    %2208 = vmatprep.subr.mxu0 %v2067
    %2209 = vmatpush1.msra.mxu0 %v2066
    %2210 = vmatprep.subr.mxu0 %v2063
    %2211 = vmatpush1.msra.mxu0 %v2062
    %2212 = vmatprep.subr.mxu0 %v2059
    %2213 = vmatpush1.msra.mxu0 %v2058
    %2214 = vmatprep.subr.mxu0 %v2055
    %2215 = vmatpush1.msra.mxu0 %v2054
    %2216 = vmatprep.subr.mxu0 %v2051
    %2217 = vmatpush1.msra.mxu0 %v2050
    %2218 = vmatprep.subr.mxu0 %v2047
    %2219 = vmatpush1.msra.mxu0 %v2046
    %2220 = vmatprep.subr.mxu0 %v2043
    %2221 = vmatpush1.msra.mxu0 %v2042
    %2222 = vmatprep.subr.mxu0 %v2039
    %2223 = vmatpush1.msra.mxu0 %v2038
    %2224 = vmatprep.subr.mxu0 %v2035
    %2225 = vmatpush1.msra.mxu0 %v2034
    %2226 = vmatprep.subr.mxu0 %v2031
    %2227 = vmatpush1.msra.mxu0 %v2030
    %2228 = vmatprep.subr.mxu0 %v2027
    %2229 = vmatpush1.msra.mxu0 %v2026
    %2230 = vmatprep.subr.mxu0 %v2023
    %2231 = vmatpush1.msra.mxu0 %v2022
    %2232 = vmatprep.subr.mxu0 0.0
    %2233 = vmatpush2.msra.mxu0 0.0
    %2234 = vmatprep.subr.mxu0 0.0
    %2235 = vmatpush2.msra.mxu0 0.0
    %2236 = vmatprep.subr.mxu0 0.0
    %2237 = vmatpush2.msra.mxu0 0.0
    %2238 = vmatprep.subr.mxu0 0.0
    %2239 = vmatpush2.msra.mxu0 0.0
    %2240 = vmatprep.subr.mxu0 0.0
    %2241 = vmatpush2.msra.mxu0 0.0
    %2242 = vmatprep.subr.mxu0 0.0
    %2243 = vmatpush2.msra.mxu0 0.0
    %2244 = vmatprep.subr.mxu0 0.0
    %2245 = vmatpush2.msra.mxu0 0.0
    %2246 = vmatprep.subr.mxu0 %v2119
    %2247 = vmatpush2.msra.mxu0 %v2118
    %2248 = vmatprep.subr.mxu0 %v2115
    %2249 = vmatpush2.msra.mxu0 %v2114
    %2250 = vmatprep.subr.mxu0 %v2111
    %2251 = vmatpush2.msra.mxu0 %v2110
    %2252 = vmatprep.subr.mxu0 %v2107
    %2253 = vmatpush2.msra.mxu0 %v2106
    %2254 = vmatprep.subr.mxu0 %v2103
    %2255 = vmatpush2.msra.mxu0 %v2102
    %2256 = vmatprep.subr.mxu0 %v2099
    %2257 = vmatpush2.msra.mxu0 %v2098
    %2258 = vmatprep.subr.mxu0 %v2095
    %2259 = vmatpush2.msra.mxu0 %v2094
    %2260 = vmatprep.subr.mxu0 %v2091
    %2261 = vmatpush2.msra.mxu0 %v2090
    %2262 = vmatprep.subr.mxu0 %v2087
    %2263 = vmatpush2.msra.mxu0 %v2086
    %2264 = vmatprep.mubr.f32.mxu0 %v2127
    %2265 = vmatmul.mubr.f32.gmra.mxu0 %v2018
    %v2266 = vpop.f32.mrf.mxu0
    %v2267 = vadd.f32 %v2124, %v2266
    %v2268 = vpop.f32.mrf.mxu0
    %v2269 = vadd.f32 %v2124, %v2268
    %2270 = vdwg.mxu0
    %v2271 = vld [vmem:[%s10] sm:$0xff]
    %vm2272 = vcmp.gt.f32.partialorder %v2196, 0.0
    %vm2273 = vcmp.gt.f32.partialorder %v2198, 0.0
    %vm2274 = vcmp.gt.f32.partialorder %v2267, 0.0
    %vm2275 = vcmp.gt.f32.partialorder %v2269, 0.0
    %2277 = vset.pattern.permute.xlu0 0
    %2278 = vperm.xlu0 %2277, %v2271
    %v2279 = vpop.permute.xlu0 %2278
    %v2281 = vmul.f32 %v2279, %v2196
    %v2282 = vmul.f32 %v2279, %v2198
    %v2283 = vmul.f32 %v2279, %v2267
    %v2284 = vmul.f32 %v2279, %v2269
    %v2285 = vsel %vm2272, %v2196, %v2281
    %v2286 = vsel %vm2273, %v2198, %v2282
    %v2287 = vsel %vm2274, %v2267, %v2283
    %v2288 = vsel %vm2275, %v2269, %v2284
    %2289 = vst [vmem:[#allocation4 + $0x40] sm:$0xff] %v2285
    %2290 = vst [vmem:[#allocation4 + $0x48] sm:$0xff] %v2286
    %2291 = vst [vmem:[#allocation4 + $0x50] sm:$0xff] %v2287
    %2292 = vst [vmem:[#allocation4 + $0x58] sm:$0xff] %v2288
    // Predicated region
    $region46: #{tpu_custom_call.1} parent=1 // pred_check
      _
    $region47: #{tpu_custom_call.1} parent=1 // pred_check_branch
      %2294 = sbr.rel (0) target = $region49
    $region48: #{tpu_custom_call.1} parent=1 // pred_region
      %s2296 = ssub.s32 2048, 2048
      %2297 = vsyncadd [#allocation5], %s2296
      %s2298 = sshll.u32 [#allocation4], 4
      %s2299 = int_to_ptr.vmem [resolvable:$true] %s2298
      %2304 = dma.vmem_to_hbm [thread:$0]  %s2299, 2048, %s11, [#allocation5], 512, 512, 32
    $region49: #{tpu_custom_call.1} parent=1 // pred_fallthru
      _
    // Predicated region
    $region50: #{tpu_custom_call.1} parent=1 // pred_check
      _
    $region51: #{tpu_custom_call.1} parent=1 // pred_check_branch
      %2306 = sbr.rel (0) target = $region53
    $region52: #{tpu_custom_call.1} parent=1 // pred_region
      %2307 = dma.done [#allocation5], 2048
    $region53: #{tpu_custom_call.1} parent=1 // pred_fallthru
      _
    %2308 = vsyncpa [#allocation5], 1

</llo_original>
